<compile_context>
chip_gen: v7x
topology: tpu7x:2x2x1
jax: 0.10.0
libtpu: 0.0.40
codegen_flags: <defaults>
</compile_context>

<pallas_src>
import numpy as np
import jax
import jax.numpy as jnp
from jax import lax
from jax.experimental import pallas as pl
from jax.experimental.pallas import tpu as pltpu


def _same_pad(K, d):
    return d * K // 2 - 1 if d > 1 else K // 2


# ----------------------------------------------------------------------------
# Host-side parameter preparation (run ONCE, outside jit)
# ----------------------------------------------------------------------------
def prepare_params(params, conf_list):
    """Fold BN scale into matmul weights, collapse separable convs into one im2col
    matmul, fuse each residual 1x1 conv into the first conv of its block (extra output
    rows, weight in the centre-tap columns), cast weights to bf16 (first/final f32).
    Returns (flat param list [w0,s0,w1,s1,...,final_w,final_b], static layer metadata)."""
    flat, layers = [], []
    li = 0
    for bp, conf in zip(params['blocks'], conf_list):
        assert conf['stride'] == 1, "stride > 1 not supported"  # TODO(synk): strided path
        K, d = conf['kernel'], conf['dilation']
        p = _same_pad(K, d)
        assert 2 * p == d * (K - 1), "dilation/kernel combo changes time length"
        residual = conf['residual']
        for idx in range(conf['repeat']):
            lp = bp['convs'][idx]
            if conf['separable']:
                # depthwise (Cin,K) + pointwise (Cout,Cin) + BN -> one (Cout, K*Cin)
                cin = lp['dw_w'].shape[0]
                cout = lp['pw_w'].shape[0]
                w = jnp.concatenate(
                    [lp['pw_w'] * lp['dw_w'][:, k][None, :] for k in range(K)], axis=1)
                w = w * lp['scale']                              # fold BN scale
                sh = lp['shift'] + lp['scale'] * (lp['pw_w'] @ lp['dw_b'])
            else:
                cout, kc = lp['w'].shape
                cin = kc // K
                w = lp['w'] * lp['scale']                        # fold BN scale
                sh = lp['shift']
            res_rows = 0
            if residual and idx == 0:
                # residual 1x1 conv + BN rides along as extra output rows of the SAME
                # im2col matmul; its weight sits in the centre-tap (offset-0) columns.
                rw = bp['res_w'] * bp['res_scale']
                kc_idx = p // d
                assert kc_idx * d == p, "no centre tap (even kernel?)"
                left = jnp.zeros((rw.shape[0], kc_idx * cin), jnp.float32)
                right = jnp.zeros((rw.shape[0], (K - 1 - kc_idx) * cin), jnp.float32)
                w = jnp.concatenate(
                    [w, jnp.concatenate([left, rw, right], axis=1)], axis=0)
                sh = jnp.concatenate([sh, bp['res_shift']], axis=0)
                res_rows = rw.shape[0]
            wdtype = jnp.float32 if li == 0 else jnp.bfloat16    # first matmul stays f32
            flat += [w.astype(wdtype), sh.astype(jnp.float32)]
            layers.append(dict(
                K=K, d=d, p=p, cout=cout, res_rows=res_rows,
                add_res=(residual and idx == conf['repeat'] - 1),
                relu=(residual or idx == conf['repeat'] - 1)))
            li += 1
    flat += [params['final_w'].astype(jnp.float32),              # final matmul stays f32
             params['final_b'].astype(jnp.float32)]
    return flat, layers


# ----------------------------------------------------------------------------
# Fused Pallas kernel (fold batch elements per grid step, batch in the lane axis)
# ----------------------------------------------------------------------------
def make_quartznet_kernel(layers, T, L_seg, fold):
    W = fold * L_seg
    p_max = max(l['p'] for l in layers)
    assert T + p_max <= L_seg, "need >= p zero pad lanes per segment for roll-based taps"

    def kernel(*refs):
        x_ref, o_ref = refs[0], refs[-1]
        it = iter(refs[1:-1])

        # per-segment time mask (lanes >= T are pad); hoisted, built once per grid step
        seg = lax.broadcasted_iota(jnp.int32, (1, L_seg), 1)
        seg_mask = (seg < T).astype(jnp.float32)
        maskf = jnp.concatenate([seg_mask] * fold, axis=1) if fold > 1 else seg_mask

        def mm(w, v):                              # bf16 MXU path, f32 accumulation
            if w.dtype == jnp.bfloat16:
                v = v.astype(jnp.bfloat16)
            return jnp.dot(w, v, preferred_element_type=jnp.float32)

        def taps(h, K, d, p):
            # h has zero pad lanes; taps[k][:, t] == h[:, t + k*d - p] with zeros outside
            # [0, T) per segment.  pltpu.roll runs on the XLU slot; wrap-around lands in
            # pad-zero lanes because T + p <= L_seg.
            out = []
            for k in range(K):
                s = (p - k * d) % W
                out.append(h if s == 0 else pltpu.roll(h, shift=s, axis=1))
            return out

        h = x_ref[...].astype(jnp.float32)         # host-padded: pad lanes already zero
        clean = True                               # "pad lanes of h are exactly zero"
        res = None

        for lyr in layers:
            w, sh = next(it)[...], next(it)[...]
            if not clean:                          # mask lazily, only before building taps
                h = h * maskf
            xcol = jnp.concatenate(taps(h, lyr['K'], lyr['d'], lyr['p']), axis=0)
            z = mm(w, xcol) + sh                   # one MXU matmul per conv layer
            if lyr['res_rows']:                    # fused residual rows ride along
                y, res = z[:lyr['cout']], z[lyr['cout']:]
            else:
                y = z
            if lyr['add_res']:
                y = y + res
            if lyr['relu']:
                y = jnp.maximum(y, 0.0)
            h = y
            clean = False                          # matmul output pad lanes are garbage

        fw, fb = next(it)[...], next(it)[...]      # final 1x1 conv (column-local, no mask)
        o_ref[...] = (mm(fw, h) + fb).astype(o_ref.dtype)

    return kernel


# ----------------------------------------------------------------------------
# pallas_call wrapper
# ----------------------------------------------------------------------------
def _param_spec(a):
    nd = a.ndim
    return pl.BlockSpec(a.shape, lambda g: (0,) * nd)


def _cost_estimate(flat, total_lanes, x_bytes, out_bytes):
    flops, pbytes = 0, 0
    for i, a in enumerate(flat):
        pbytes += int(a.size) * int(a.dtype.itemsize)
        if i % 2 == 0:                             # weights sit at even positions
            flops += 2 * int(a.shape[0]) * int(a.shape[1]) * int(total_lanes)
    return pl.CostEstimate(flops=int(flops), transcendentals=0,
                           bytes_accessed=int(x_bytes + pbytes + out_bytes))


def quartznet_forward(x, flat, layers, num_classes, batch_fold=2):
    B, feat_in, T = x.shape
    p_max = max(l['p'] for l in layers)
    L_seg = max(128, ((T + p_max + 127) // 128) * 128)   # lane-dense segment per example
    fold = batch_fold if (batch_fold >= 1 and B % batch_fold == 0) else 1
    G = B // fold
    W = fold * L_seg

    # (B, C, T) -> zero-pad time -> fold `fold` batch elements into the lane axis
    xp = jnp.pad(x, ((0, 0), (0, 0), (0, L_seg - T)))
    xp = xp.reshape(G, fold, feat_in, L_seg).transpose(0, 2, 1, 3).reshape(G, feat_in, W)

    kernel = make_quartznet_kernel(layers, T=T, L_seg=L_seg, fold=fold)

    in_specs = [pl.BlockSpec((None, feat_in, W), lambda g: (g, 0, 0))]
    in_specs += [_param_spec(a) for a in flat]
    out_spec = pl.BlockSpec((None, num_classes, W), lambda g: (g, 0, 0))

    cost = _cost_estimate(flat, G * W, xp.size * 4, G * num_classes * W * 4)

    y = pl.pallas_call(
        kernel,
        grid=(G,),
        in_specs=in_specs,
        out_specs=out_spec,
        out_shape=jax.ShapeDtypeStruct((G, num_classes, W), x.dtype),
        compiler_params=pltpu.CompilerParams(dimension_semantics=("parallel",)),
        cost_estimate=cost,
    )(xp, *flat)

    y = y.reshape(G, num_classes, fold, L_seg).transpose(0, 2, 1, 3)
    y = y.reshape(B, num_classes, L_seg)
    return y[:, :, :T]


# ----------------------------------------------------------------------------
# Parameter init (deterministic, synthetic) + BN folding
# ----------------------------------------------------------------------------
def _bn_fold(key, C, conv_bias, eps=1e-5):
    k1, k2, k3, k4 = jax.random.split(key, 4)
    gamma = 1.0 + 0.1 * jax.random.normal(k1, (C,), jnp.float32)
    beta = 0.1 * jax.random.normal(k2, (C,), jnp.float32)
    mean = 0.1 * jax.random.normal(k3, (C,), jnp.float32)
    var = jnp.abs(jax.random.normal(k4, (C,), jnp.float32)) + 0.5
    scale = gamma / jnp.sqrt(var + eps)
    shift = beta + (conv_bias - mean) * scale
    return scale[:, None], shift[:, None]


def init_block(key, feat_in, conf):
    filters, K, sep = conf['filters'], conf['kernel'], conf['separable']
    p = {'convs': []}
    keys = jax.random.split(key, conf['repeat'] + 2)
    if conf['residual']:
        kw, kb = jax.random.split(keys[-1])
        p['res_w'] = (1.0 / np.sqrt(feat_in)) * jax.random.normal(
            kw, (filters, feat_in), jnp.float32)
        res_b = 0.1 * jax.random.normal(kb, (filters,), jnp.float32)
        p['res_scale'], p['res_shift'] = _bn_fold(keys[-2], filters, res_b)
    cin = feat_in
    for idx in range(conf['repeat']):
        k1, k2, k3, k4, k5 = jax.random.split(keys[idx], 5)
        layer = {}
        if sep:
            layer['dw_w'] = 0.3 * jax.random.normal(k1, (cin, K), jnp.float32)
            layer['dw_b'] = 0.1 * jax.random.normal(k2, (cin, 1), jnp.float32)
            layer['pw_w'] = (1.0 / np.sqrt(cin)) * jax.random.normal(
                k3, (filters, cin), jnp.float32)
            pw_b = 0.1 * jax.random.normal(k4, (filters,), jnp.float32)
            layer['scale'], layer['shift'] = _bn_fold(k5, filters, pw_b)
        else:
            # im2col weight layout: (Cout, K*Cin), tap-major / channel-minor
            layer['w'] = (1.0 / np.sqrt(cin * K)) * jax.random.normal(
                k1, (filters, K * cin), jnp.float32)
            b = 0.1 * jax.random.normal(k2, (filters,), jnp.float32)
            layer['scale'], layer['shift'] = _bn_fold(k3, filters, b)
        p['convs'].append(layer)
        cin = filters
    return p


def init_quartznet(key, feat_in, conf_list, num_classes):
    keys = jax.random.split(key, len(conf_list) + 1)
    blocks, cin = [], feat_in
    for kb, conf in zip(keys[:-1], conf_list):
        blocks.append(init_block(kb, cin, conf))
        cin = conf['filters']
    kw, kb2 = jax.random.split(keys[-1])
    final_w = (1.0 / np.sqrt(cin)) * jax.random.normal(
        kw, (num_classes, cin), jnp.float32)
    final_b = 0.1 * jax.random.normal(kb2, (num_classes,), jnp.float32)
    return {'blocks': blocks, 'final_w': final_w, 'final_b': final_b[:, None]}


# ----------------------------------------------------------------------------
# Pure-JAX reference (lax.conv, f32 HIGHEST) for validation
# ----------------------------------------------------------------------------
def _ref_conv1d(x, w_oik, b, stride, dilation, padding, groups=1):
    y = lax.conv_general_dilated(
        x, w_oik, window_strides=(stride,), padding=[(padding, padding)],
        rhs_dilation=(dilation,), dimension_numbers=('NCH', 'OIH', 'NCH'),
        feature_group_count=groups, precision=lax.Precision.HIGHEST)
    if b is not None:
        y = y + b[None, :, None]
    return y


def ref_quartznet(x, params, conf_list):
    for bp, conf in zip(params['blocks'], conf_list):
        K, dil, stride = conf['kernel'], conf['dilation'], conf['stride']
        sep, residual, repeat = conf['separable'], conf['residual'], conf['repeat']
        pad = _same_pad(K, dil)
        res = None
        if residual:
            res = (_ref_conv1d(x, bp['res_w'][:, :, None], None, 1, 1, 0)
                   * bp['res_scale'][None] + bp['res_shift'][None])
        for idx in range(repeat):
            lp = bp['convs'][idx]
            if sep:
                cin = lp['dw_w'].shape[0]
                x = _ref_conv1d(x, lp['dw_w'][:, None, :], lp['dw_b'][:, 0],
                                stride, dil, pad, groups=cin)
                x = _ref_conv1d(x, lp['pw_w'][:, :, None], None, 1, 1, 0)
            else:
                cout = lp['w'].shape[0]
                cin = lp['w'].shape[1] // K
                w_oik = jnp.transpose(lp['w'].reshape(cout, K, cin), (0, 2, 1))
                x = _ref_conv1d(x, w_oik, None, stride, dil, pad)
            x = x * lp['scale'][None] + lp['shift'][None]
            last = idx == repeat - 1
            if last and residual:
                x = x + res
            if last or residual:
                x = jnp.maximum(x, 0.0)
    return _ref_conv1d(x, params['final_w'][:, :, None],
                       params['final_b'][:, 0], 1, 1, 0)


# ----------------------------------------------------------------------------
if __name__ == "__main__":
    QUARTZNET_CONF = [
        {'filters': 32, 'repeat': 2, 'kernel': 3, 'stride': 1, 'dilation': 1,
         'residual': True, 'separable': False},
        {'filters': 32, 'repeat': 3, 'kernel': 5, 'stride': 1, 'dilation': 1,
         'residual': True, 'separable': True},
        {'filters': 48, 'repeat': 1, 'kernel': 7, 'stride': 1, 'dilation': 1,
         'residual': False, 'separable': False},
    ]
    B, FEAT_IN, T, NUM_CLASSES = 2, 16, 32, 10

    key = jax.random.PRNGKey(0)
    kx, kp = jax.random.split(key)
    x = jax.random.normal(kx, (B, FEAT_IN, T), jnp.float32)
    params = init_quartznet(kp, FEAT_IN, QUARTZNET_CONF, NUM_CLASSES)

    # Host-side prep once (BN fold, separable collapse, residual fusion, bf16 cast).
    flat, layers = prepare_params(params, QUARTZNET_CONF)

    fwd = jax.jit(lambda xx, ff: quartznet_forward(xx, ff, layers, NUM_CLASSES,
                                                   batch_fold=2))
    y = jax.block_until_ready(fwd(x, flat))
    assert y.shape == (B, NUM_CLASSES, T), y.shape

    y_ref = jax.block_until_ready(ref_quartznet(x, params, QUARTZNET_CONF))
    # bf16 matmul weights across stacked layers vs f32 reference -> loose tolerance.
    np.testing.assert_allclose(np.asarray(y), np.asarray(y_ref), rtol=5e-2, atol=5e-2)

    print("KERNEL_OK")
</pallas_src>

<mosaic_0001>
module attributes {stable_mosaic.version = 11 : i64} {
  func.func @kernel(%arg0: i32, %arg1: memref<1x16x256xf32, #tpu.memory_space<vmem>>, %arg2: memref<64x48xf32, #tpu.memory_space<vmem>>, %arg3: memref<64x1xf32, #tpu.memory_space<vmem>>, %arg4: memref<32x96xbf16, #tpu.memory_space<vmem>>, %arg5: memref<32x1xf32, #tpu.memory_space<vmem>>, %arg6: memref<64x160xbf16, #tpu.memory_space<vmem>>, %arg7: memref<64x1xf32, #tpu.memory_space<vmem>>, %arg8: memref<32x160xbf16, #tpu.memory_space<vmem>>, %arg9: memref<32x1xf32, #tpu.memory_space<vmem>>, %arg10: memref<32x160xbf16, #tpu.memory_space<vmem>>, %arg11: memref<32x1xf32, #tpu.memory_space<vmem>>, %arg12: memref<48x224xbf16, #tpu.memory_space<vmem>>, %arg13: memref<48x1xf32, #tpu.memory_space<vmem>>, %arg14: memref<10x48xf32, #tpu.memory_space<vmem>>, %arg15: memref<10x1xf32, #tpu.memory_space<vmem>>, %arg16: memref<1x10x256xf32, #tpu.memory_space<vmem>>) attributes {dimension_semantics = [#tpu.dimension_semantics<parallel>], iteration_bounds = array<i64: 1>, scalar_prefetch = 0 : i64, scratch_operands = 0 : i64, tpu.core_type = #tpu.core_type<tc>, window_params = [{transform_indices = @transform_0, window_bounds = array<i64: 1, 16, 256>}, {pipeline_mode = #tpu.pipeline_mode<synchronous>, transform_indices = @transform_1, window_bounds = array<i64: 64, 48>}, {pipeline_mode = #tpu.pipeline_mode<synchronous>, transform_indices = @transform_2, window_bounds = array<i64: 64, 1>}, {pipeline_mode = #tpu.pipeline_mode<synchronous>, transform_indices = @transform_3, window_bounds = array<i64: 32, 96>}, {pipeline_mode = #tpu.pipeline_mode<synchronous>, transform_indices = @transform_4, window_bounds = array<i64: 32, 1>}, {pipeline_mode = #tpu.pipeline_mode<synchronous>, transform_indices = @transform_5, window_bounds = array<i64: 64, 160>}, {pipeline_mode = #tpu.pipeline_mode<synchronous>, transform_indices = @transform_6, window_bounds = array<i64: 64, 1>}, {pipeline_mode = #tpu.pipeline_mode<synchronous>, transform_indices = @transform_7, window_bounds = array<i64: 32, 160>}, {pipeline_mode = #tpu.pipeline_mode<synchronous>, transform_indices = @transform_8, window_bounds = array<i64: 32, 1>}, {pipeline_mode = #tpu.pipeline_mode<synchronous>, transform_indices = @transform_9, window_bounds = array<i64: 32, 160>}, {pipeline_mode = #tpu.pipeline_mode<synchronous>, transform_indices = @transform_10, window_bounds = array<i64: 32, 1>}, {pipeline_mode = #tpu.pipeline_mode<synchronous>, transform_indices = @transform_11, window_bounds = array<i64: 48, 224>}, {pipeline_mode = #tpu.pipeline_mode<synchronous>, transform_indices = @transform_12, window_bounds = array<i64: 48, 1>}, {pipeline_mode = #tpu.pipeline_mode<synchronous>, transform_indices = @transform_13, window_bounds = array<i64: 10, 48>}, {pipeline_mode = #tpu.pipeline_mode<synchronous>, transform_indices = @transform_14, window_bounds = array<i64: 10, 1>}, {transform_indices = @transform_15, window_bounds = array<i64: 1, 10, 256>}]} {
    %0 = tpu.iota {dimensions = array<i32: 1>} : vector<1x128xi32>
    %c32_i32 = arith.constant 32 : i32
    %1 = vector.broadcast %c32_i32 : i32 to vector<1x128xi32>
    %2 = arith.cmpi slt, %0, %1 : vector<1x128xi32>
    %3 = arith.extui %2 : vector<1x128xi1> to vector<1x128xi32>
    %4 = arith.sitofp %3 : vector<1x128xi32> to vector<1x128xf32>
    %5 = tpu.concatenate %4, %4 in 1 : vector<1x128xf32>, vector<1x128xf32> -> vector<1x256xf32>
    %c0 = arith.constant 0 : index
    %c0_0 = arith.constant 0 : index
    %c0_1 = arith.constant 0 : index
    %6 = vector.load %arg1[%c0, %c0_0, %c0_1] : memref<1x16x256xf32, #tpu.memory_space<vmem>>, vector<1x16x256xf32>
    %7 = vector.shape_cast %6 : vector<1x16x256xf32> to vector<16x256xf32>
    %c0_2 = arith.constant 0 : index
    %c0_3 = arith.constant 0 : index
    %8 = vector.load %arg2[%c0_2, %c0_3] : memref<64x48xf32, #tpu.memory_space<vmem>>, vector<64x48xf32>
    %c0_4 = arith.constant 0 : index
    %c0_5 = arith.constant 0 : index
    %9 = vector.load %arg3[%c0_4, %c0_5] : memref<64x1xf32, #tpu.memory_space<vmem>>, vector<64x1xf32>
    %c1_i32 = arith.constant 1 : i32
    %10 = tpu.dynamic_rotate %7 by %c1_i32 dim 1 : vector<16x256xf32>, i32 -> vector<16x256xf32>
    %c255_i32 = arith.constant 255 : i32
    %11 = tpu.dynamic_rotate %7 by %c255_i32 dim 1 : vector<16x256xf32>, i32 -> vector<16x256xf32>
    %12 = tpu.concatenate %10, %7, %11 in 0 : vector<16x256xf32>, vector<16x256xf32>, vector<16x256xf32> -> vector<48x256xf32>
    %cst = arith.constant dense<0.000000e+00> : vector<64x256xf32>
    %13 = tpu.matmul %8, %12, %cst {dimension_numbers = #tpu.dot_dimension_numbers<[1], [0], [0], [1], [0, 0, 1, 1], [], []>} : vector<64x48xf32>, vector<48x256xf32>, vector<64x256xf32> -> vector<64x256xf32>
    %14 = vector.broadcast %9 : vector<64x1xf32> to vector<64x256xf32>
    %15 = arith.addf %13, %14 : vector<64x256xf32>
    %16 = vector.extract_strided_slice %15 {offsets = [0, 0], sizes = [32, 256], strides = [1, 1]} : vector<64x256xf32> to vector<32x256xf32>
    %17 = vector.extract_strided_slice %15 {offsets = [32, 0], sizes = [32, 256], strides = [1, 1]} : vector<64x256xf32> to vector<32x256xf32>
    %cst_6 = arith.constant 0.000000e+00 : f32
    %18 = vector.broadcast %cst_6 : f32 to vector<32x256xf32>
    %19 = arith.maximumf %16, %18 : vector<32x256xf32>
    %c0_7 = arith.constant 0 : index
    %c0_8 = arith.constant 0 : index
    %20 = vector.load %arg4[%c0_7, %c0_8] : memref<32x96xbf16, #tpu.memory_space<vmem>>, vector<32x96xbf16>
    %c0_9 = arith.constant 0 : index
    %c0_10 = arith.constant 0 : index
    %21 = vector.load %arg5[%c0_9, %c0_10] : memref<32x1xf32, #tpu.memory_space<vmem>>, vector<32x1xf32>
    %22 = vector.broadcast %5 : vector<1x256xf32> to vector<32x256xf32>
    %23 = arith.mulf %19, %22 : vector<32x256xf32>
    %c1_i32_11 = arith.constant 1 : i32
    %24 = tpu.dynamic_rotate %23 by %c1_i32_11 dim 1 : vector<32x256xf32>, i32 -> vector<32x256xf32>
    %c255_i32_12 = arith.constant 255 : i32
    %25 = tpu.dynamic_rotate %23 by %c255_i32_12 dim 1 : vector<32x256xf32>, i32 -> vector<32x256xf32>
    %26 = tpu.concatenate %24, %23, %25 in 0 : vector<32x256xf32>, vector<32x256xf32>, vector<32x256xf32> -> vector<96x256xf32>
    %27 = arith.truncf %26 : vector<96x256xf32> to vector<96x256xbf16>
    %cst_13 = arith.constant dense<0.000000e+00> : vector<32x256xf32>
    %28 = tpu.matmul %20, %27, %cst_13 {dimension_numbers = #tpu.dot_dimension_numbers<[1], [0], [0], [1], [0, 0, 1, 1], [], []>} : vector<32x96xbf16>, vector<96x256xbf16>, vector<32x256xf32> -> vector<32x256xf32>
    %29 = vector.broadcast %21 : vector<32x1xf32> to vector<32x256xf32>
    %30 = arith.addf %28, %29 : vector<32x256xf32>
    %31 = arith.addf %30, %17 : vector<32x256xf32>
    %cst_14 = arith.constant 0.000000e+00 : f32
    %32 = vector.broadcast %cst_14 : f32 to vector<32x256xf32>
    %33 = arith.maximumf %31, %32 : vector<32x256xf32>
    %c0_15 = arith.constant 0 : index
    %c0_16 = arith.constant 0 : index
    %34 = vector.load %arg6[%c0_15, %c0_16] : memref<64x160xbf16, #tpu.memory_space<vmem>>, vector<64x160xbf16>
    %c0_17 = arith.constant 0 : index
    %c0_18 = arith.constant 0 : index
    %35 = vector.load %arg7[%c0_17, %c0_18] : memref<64x1xf32, #tpu.memory_space<vmem>>, vector<64x1xf32>
    %36 = vector.broadcast %5 : vector<1x256xf32> to vector<32x256xf32>
    %37 = arith.mulf %33, %36 : vector<32x256xf32>
    %c2_i32 = arith.constant 2 : i32
    %38 = tpu.dynamic_rotate %37 by %c2_i32 dim 1 : vector<32x256xf32>, i32 -> vector<32x256xf32>
    %c1_i32_19 = arith.constant 1 : i32
    %39 = tpu.dynamic_rotate %37 by %c1_i32_19 dim 1 : vector<32x256xf32>, i32 -> vector<32x256xf32>
    %c255_i32_20 = arith.constant 255 : i32
    %40 = tpu.dynamic_rotate %37 by %c255_i32_20 dim 1 : vector<32x256xf32>, i32 -> vector<32x256xf32>
    %c254_i32 = arith.constant 254 : i32
    %41 = tpu.dynamic_rotate %37 by %c254_i32 dim 1 : vector<32x256xf32>, i32 -> vector<32x256xf32>
    %42 = tpu.concatenate %38, %39, %37, %40, %41 in 0 : vector<32x256xf32>, vector<32x256xf32>, vector<32x256xf32>, vector<32x256xf32>, vector<32x256xf32> -> vector<160x256xf32>
    %43 = arith.truncf %42 : vector<160x256xf32> to vector<160x256xbf16>
    %cst_21 = arith.constant dense<0.000000e+00> : vector<64x256xf32>
    %44 = tpu.matmul %34, %43, %cst_21 {dimension_numbers = #tpu.dot_dimension_numbers<[1], [0], [0], [1], [0, 0, 1, 1], [], []>} : vector<64x160xbf16>, vector<160x256xbf16>, vector<64x256xf32> -> vector<64x256xf32>
    %45 = vector.broadcast %35 : vector<64x1xf32> to vector<64x256xf32>
    %46 = arith.addf %44, %45 : vector<64x256xf32>
    %47 = vector.extract_strided_slice %46 {offsets = [0, 0], sizes = [32, 256], strides = [1, 1]} : vector<64x256xf32> to vector<32x256xf32>
    %48 = vector.extract_strided_slice %46 {offsets = [32, 0], sizes = [32, 256], strides = [1, 1]} : vector<64x256xf32> to vector<32x256xf32>
    %cst_22 = arith.constant 0.000000e+00 : f32
    %49 = vector.broadcast %cst_22 : f32 to vector<32x256xf32>
    %50 = arith.maximumf %47, %49 : vector<32x256xf32>
    %c0_23 = arith.constant 0 : index
    %c0_24 = arith.constant 0 : index
    %51 = vector.load %arg8[%c0_23, %c0_24] : memref<32x160xbf16, #tpu.memory_space<vmem>>, vector<32x160xbf16>
    %c0_25 = arith.constant 0 : index
    %c0_26 = arith.constant 0 : index
    %52 = vector.load %arg9[%c0_25, %c0_26] : memref<32x1xf32, #tpu.memory_space<vmem>>, vector<32x1xf32>
    %53 = vector.broadcast %5 : vector<1x256xf32> to vector<32x256xf32>
    %54 = arith.mulf %50, %53 : vector<32x256xf32>
    %c2_i32_27 = arith.constant 2 : i32
    %55 = tpu.dynamic_rotate %54 by %c2_i32_27 dim 1 : vector<32x256xf32>, i32 -> vector<32x256xf32>
    %c1_i32_28 = arith.constant 1 : i32
    %56 = tpu.dynamic_rotate %54 by %c1_i32_28 dim 1 : vector<32x256xf32>, i32 -> vector<32x256xf32>
    %c255_i32_29 = arith.constant 255 : i32
    %57 = tpu.dynamic_rotate %54 by %c255_i32_29 dim 1 : vector<32x256xf32>, i32 -> vector<32x256xf32>
    %c254_i32_30 = arith.constant 254 : i32
    %58 = tpu.dynamic_rotate %54 by %c254_i32_30 dim 1 : vector<32x256xf32>, i32 -> vector<32x256xf32>
    %59 = tpu.concatenate %55, %56, %54, %57, %58 in 0 : vector<32x256xf32>, vector<32x256xf32>, vector<32x256xf32>, vector<32x256xf32>, vector<32x256xf32> -> vector<160x256xf32>
    %60 = arith.truncf %59 : vector<160x256xf32> to vector<160x256xbf16>
    %cst_31 = arith.constant dense<0.000000e+00> : vector<32x256xf32>
    %61 = tpu.matmul %51, %60, %cst_31 {dimension_numbers = #tpu.dot_dimension_numbers<[1], [0], [0], [1], [0, 0, 1, 1], [], []>} : vector<32x160xbf16>, vector<160x256xbf16>, vector<32x256xf32> -> vector<32x256xf32>
    %62 = vector.broadcast %52 : vector<32x1xf32> to vector<32x256xf32>
    %63 = arith.addf %61, %62 : vector<32x256xf32>
    %cst_32 = arith.constant 0.000000e+00 : f32
    %64 = vector.broadcast %cst_32 : f32 to vector<32x256xf32>
    %65 = arith.maximumf %63, %64 : vector<32x256xf32>
    %c0_33 = arith.constant 0 : index
    %c0_34 = arith.constant 0 : index
    %66 = vector.load %arg10[%c0_33, %c0_34] : memref<32x160xbf16, #tpu.memory_space<vmem>>, vector<32x160xbf16>
    %c0_35 = arith.constant 0 : index
    %c0_36 = arith.constant 0 : index
    %67 = vector.load %arg11[%c0_35, %c0_36] : memref<32x1xf32, #tpu.memory_space<vmem>>, vector<32x1xf32>
    %68 = vector.broadcast %5 : vector<1x256xf32> to vector<32x256xf32>
    %69 = arith.mulf %65, %68 : vector<32x256xf32>
    %c2_i32_37 = arith.constant 2 : i32
    %70 = tpu.dynamic_rotate %69 by %c2_i32_37 dim 1 : vector<32x256xf32>, i32 -> vector<32x256xf32>
    %c1_i32_38 = arith.constant 1 : i32
    %71 = tpu.dynamic_rotate %69 by %c1_i32_38 dim 1 : vector<32x256xf32>, i32 -> vector<32x256xf32>
    %c255_i32_39 = arith.constant 255 : i32
    %72 = tpu.dynamic_rotate %69 by %c255_i32_39 dim 1 : vector<32x256xf32>, i32 -> vector<32x256xf32>
    %c254_i32_40 = arith.constant 254 : i32
    %73 = tpu.dynamic_rotate %69 by %c254_i32_40 dim 1 : vector<32x256xf32>, i32 -> vector<32x256xf32>
    %74 = tpu.concatenate %70, %71, %69, %72, %73 in 0 : vector<32x256xf32>, vector<32x256xf32>, vector<32x256xf32>, vector<32x256xf32>, vector<32x256xf32> -> vector<160x256xf32>
    %75 = arith.truncf %74 : vector<160x256xf32> to vector<160x256xbf16>
    %cst_41 = arith.constant dense<0.000000e+00> : vector<32x256xf32>
    %76 = tpu.matmul %66, %75, %cst_41 {dimension_numbers = #tpu.dot_dimension_numbers<[1], [0], [0], [1], [0, 0, 1, 1], [], []>} : vector<32x160xbf16>, vector<160x256xbf16>, vector<32x256xf32> -> vector<32x256xf32>
    %77 = vector.broadcast %67 : vector<32x1xf32> to vector<32x256xf32>
    %78 = arith.addf %76, %77 : vector<32x256xf32>
    %79 = arith.addf %78, %48 : vector<32x256xf32>
    %cst_42 = arith.constant 0.000000e+00 : f32
    %80 = vector.broadcast %cst_42 : f32 to vector<32x256xf32>
    %81 = arith.maximumf %79, %80 : vector<32x256xf32>
    %c0_43 = arith.constant 0 : index
    %c0_44 = arith.constant 0 : index
    %82 = vector.load %arg12[%c0_43, %c0_44] : memref<48x224xbf16, #tpu.memory_space<vmem>>, vector<48x224xbf16>
    %c0_45 = arith.constant 0 : index
    %c0_46 = arith.constant 0 : index
    %83 = vector.load %arg13[%c0_45, %c0_46] : memref<48x1xf32, #tpu.memory_space<vmem>>, vector<48x1xf32>
    %84 = vector.broadcast %5 : vector<1x256xf32> to vector<32x256xf32>
    %85 = arith.mulf %81, %84 : vector<32x256xf32>
    %c3_i32 = arith.constant 3 : i32
    %86 = tpu.dynamic_rotate %85 by %c3_i32 dim 1 : vector<32x256xf32>, i32 -> vector<32x256xf32>
    %c2_i32_47 = arith.constant 2 : i32
    %87 = tpu.dynamic_rotate %85 by %c2_i32_47 dim 1 : vector<32x256xf32>, i32 -> vector<32x256xf32>
    %c1_i32_48 = arith.constant 1 : i32
    %88 = tpu.dynamic_rotate %85 by %c1_i32_48 dim 1 : vector<32x256xf32>, i32 -> vector<32x256xf32>
    %c255_i32_49 = arith.constant 255 : i32
    %89 = tpu.dynamic_rotate %85 by %c255_i32_49 dim 1 : vector<32x256xf32>, i32 -> vector<32x256xf32>
    %c254_i32_50 = arith.constant 254 : i32
    %90 = tpu.dynamic_rotate %85 by %c254_i32_50 dim 1 : vector<32x256xf32>, i32 -> vector<32x256xf32>
    %c253_i32 = arith.constant 253 : i32
    %91 = tpu.dynamic_rotate %85 by %c253_i32 dim 1 : vector<32x256xf32>, i32 -> vector<32x256xf32>
    %92 = tpu.concatenate %86, %87, %88, %85, %89, %90, %91 in 0 : vector<32x256xf32>, vector<32x256xf32>, vector<32x256xf32>, vector<32x256xf32>, vector<32x256xf32>, vector<32x256xf32>, vector<32x256xf32> -> vector<224x256xf32>
    %93 = arith.truncf %92 : vector<224x256xf32> to vector<224x256xbf16>
    %cst_51 = arith.constant dense<0.000000e+00> : vector<48x256xf32>
    %94 = tpu.matmul %82, %93, %cst_51 {dimension_numbers = #tpu.dot_dimension_numbers<[1], [0], [0], [1], [0, 0, 1, 1], [], []>} : vector<48x224xbf16>, vector<224x256xbf16>, vector<48x256xf32> -> vector<48x256xf32>
    %95 = vector.broadcast %83 : vector<48x1xf32> to vector<48x256xf32>
    %96 = arith.addf %94, %95 : vector<48x256xf32>
    %cst_52 = arith.constant 0.000000e+00 : f32
    %97 = vector.broadcast %cst_52 : f32 to vector<48x256xf32>
    %98 = arith.maximumf %96, %97 : vector<48x256xf32>
    %c0_53 = arith.constant 0 : index
    %c0_54 = arith.constant 0 : index
    %99 = vector.load %arg14[%c0_53, %c0_54] : memref<10x48xf32, #tpu.memory_space<vmem>>, vector<10x48xf32>
    %c0_55 = arith.constant 0 : index
    %c0_56 = arith.constant 0 : index
    %100 = vector.load %arg15[%c0_55, %c0_56] : memref<10x1xf32, #tpu.memory_space<vmem>>, vector<10x1xf32>
    %cst_57 = arith.constant dense<0.000000e+00> : vector<10x256xf32>
    %101 = tpu.matmul %99, %98, %cst_57 {dimension_numbers = #tpu.dot_dimension_numbers<[1], [0], [0], [1], [0, 0, 1, 1], [], []>} : vector<10x48xf32>, vector<48x256xf32>, vector<10x256xf32> -> vector<10x256xf32>
    %102 = vector.broadcast %100 : vector<10x1xf32> to vector<10x256xf32>
    %103 = arith.addf %101, %102 : vector<10x256xf32>
    %c0_58 = arith.constant 0 : index
    %c0_59 = arith.constant 0 : index
    %c0_60 = arith.constant 0 : index
    %104 = vector.load %arg16[%c0_58, %c0_59, %c0_60] : memref<1x10x256xf32, #tpu.memory_space<vmem>>, vector<1x10x256xf32>
    %105 = vector.shape_cast %104 : vector<1x10x256xf32> to vector<10x256xf32>
    %106 = vector.shape_cast %103 : vector<10x256xf32> to vector<1x10x256xf32>
    tpu.vector_store %arg16[%c0_58, %c0_59, %c0_60], %106 {strides = array<i32>} : memref<1x10x256xf32, #tpu.memory_space<vmem>>, vector<1x10x256xf32>,
    return
  }
  func.func @transform_0(%arg0: i32) -> (i32, i32, i32) {
    %c0_i32 = arith.constant 0 : i32
    %c0_i32_0 = arith.constant 0 : i32
    %c0_i32_1 = arith.constant 0 : i32
    return %arg0, %c0_i32, %c0_i32_0 : i32, i32, i32
  }
  func.func @transform_1(%arg0: i32) -> (i32, i32) {
    %c0_i32 = arith.constant 0 : i32
    %c0_i32_0 = arith.constant 0 : i32
    %c0_i32_1 = arith.constant 0 : i32
    return %c0_i32, %c0_i32_0 : i32, i32
  }
  func.func @transform_2(%arg0: i32) -> (i32, i32) {
    %c0_i32 = arith.constant 0 : i32
    %c0_i32_0 = arith.constant 0 : i32
    %c0_i32_1 = arith.constant 0 : i32
    return %c0_i32, %c0_i32_0 : i32, i32
  }
  func.func @transform_3(%arg0: i32) -> (i32, i32) {
    %c0_i32 = arith.constant 0 : i32
    %c0_i32_0 = arith.constant 0 : i32
    %c0_i32_1 = arith.constant 0 : i32
    return %c0_i32, %c0_i32_0 : i32, i32
  }
  func.func @transform_4(%arg0: i32) -> (i32, i32) {
    %c0_i32 = arith.constant 0 : i32
    %c0_i32_0 = arith.constant 0 : i32
    %c0_i32_1 = arith.constant 0 : i32
    return %c0_i32, %c0_i32_0 : i32, i32
  }
  func.func @transform_5(%arg0: i32) -> (i32, i32) {
    %c0_i32 = arith.constant 0 : i32
    %c0_i32_0 = arith.constant 0 : i32
    %c0_i32_1 = arith.constant 0 : i32
    return %c0_i32, %c0_i32_0 : i32, i32
  }
  func.func @transform_6(%arg0: i32) -> (i32, i32) {
    %c0_i32 = arith.constant 0 : i32
    %c0_i32_0 = arith.constant 0 : i32
    %c0_i32_1 = arith.constant 0 : i32
    return %c0_i32, %c0_i32_0 : i32, i32
  }
  func.func @transform_7(%arg0: i32) -> (i32, i32) {
    %c0_i32 = arith.constant 0 : i32
    %c0_i32_0 = arith.constant 0 : i32
    %c0_i32_1 = arith.constant 0 : i32
    return %c0_i32, %c0_i32_0 : i32, i32
  }
  func.func @transform_8(%arg0: i32) -> (i32, i32) {
    %c0_i32 = arith.constant 0 : i32
    %c0_i32_0 = arith.constant 0 : i32
    %c0_i32_1 = arith.constant 0 : i32
    return %c0_i32, %c0_i32_0 : i32, i32
  }
  func.func @transform_9(%arg0: i32) -> (i32, i32) {
    %c0_i32 = arith.constant 0 : i32
    %c0_i32_0 = arith.constant 0 : i32
    %c0_i32_1 = arith.constant 0 : i32
    return %c0_i32, %c0_i32_0 : i32, i32
  }
  func.func @transform_10(%arg0: i32) -> (i32, i32) {
    %c0_i32 = arith.constant 0 : i32
    %c0_i32_0 = arith.constant 0 : i32
    %c0_i32_1 = arith.constant 0 : i32
    return %c0_i32, %c0_i32_0 : i32, i32
  }
  func.func @transform_11(%arg0: i32) -> (i32, i32) {
    %c0_i32 = arith.constant 0 : i32
    %c0_i32_0 = arith.constant 0 : i32
    %c0_i32_1 = arith.constant 0 : i32
    return %c0_i32, %c0_i32_0 : i32, i32
  }
  func.func @transform_12(%arg0: i32) -> (i32, i32) {
    %c0_i32 = arith.constant 0 : i32
    %c0_i32_0 = arith.constant 0 : i32
    %c0_i32_1 = arith.constant 0 : i32
    return %c0_i32, %c0_i32_0 : i32, i32
  }
  func.func @transform_13(%arg0: i32) -> (i32, i32) {
    %c0_i32 = arith.constant 0 : i32
    %c0_i32_0 = arith.constant 0 : i32
    %c0_i32_1 = arith.constant 0 : i32
    return %c0_i32, %c0_i32_0 : i32, i32
  }
  func.func @transform_14(%arg0: i32) -> (i32, i32) {
    %c0_i32 = arith.constant 0 : i32
    %c0_i32_0 = arith.constant 0 : i32
    %c0_i32_1 = arith.constant 0 : i32
    return %c0_i32, %c0_i32_0 : i32, i32
  }
  func.func @transform_15(%arg0: i32) -> (i32, i32, i32) {
    %c0_i32 = arith.constant 0 : i32
    %c0_i32_0 = arith.constant 0 : i32
    %c0_i32_1 = arith.constant 0 : i32
    return %arg0, %c0_i32, %c0_i32_0 : i32, i32, i32
  }
}

</mosaic_0001>

<llo_original>
// kernel: _lambda_.1
$region0: #{_lambda_.1}
  #allocation0 [shape = 'u32[]', space=smem, size = 0x4, offset = 0x4, fixed_abs, tag = 'smem constant byte address 0x4 - core index']
  #allocation1 [shape = 'u32[144,128]{1,0:T(1,128)}', space=vmem, size = 0x12000, scoped, tag = 'internal scratch']
  %s0 = inlined_call_operand.vmem [shape: f32[1,16,256], index: 0, kind: input, shape index: {}]
  %s1 = inlined_call_operand.vmem [shape: f32[64,48], index: 1, kind: input, shape index: {}]
  %s2 = inlined_call_operand.vmem [shape: f32[64,1], index: 2, kind: input, shape index: {}]
  %s3 = inlined_call_operand.vmem [shape: bf16[32,96], index: 3, kind: input, shape index: {}]
  %s4 = inlined_call_operand.vmem [shape: f32[32,1], index: 4, kind: input, shape index: {}]
  %s5 = inlined_call_operand.vmem [shape: bf16[64,160], index: 5, kind: input, shape index: {}]
  %s6 = inlined_call_operand.vmem [shape: f32[64,1], index: 6, kind: input, shape index: {}]
  %s7 = inlined_call_operand.vmem [shape: bf16[32,160], index: 7, kind: input, shape index: {}]
  %s8 = inlined_call_operand.vmem [shape: f32[32,1], index: 8, kind: input, shape index: {}]
  %s9 = inlined_call_operand.vmem [shape: bf16[32,160], index: 9, kind: input, shape index: {}]
  %s10 = inlined_call_operand.vmem [shape: f32[32,1], index: 10, kind: input, shape index: {}]
  %s11 = inlined_call_operand.vmem [shape: bf16[48,224], index: 11, kind: input, shape index: {}]
  %s12 = inlined_call_operand.vmem [shape: f32[48,1], index: 12, kind: input, shape index: {}]
  %s13 = inlined_call_operand.vmem [shape: f32[10,48], index: 13, kind: input, shape index: {}]
  %s14 = inlined_call_operand.vmem [shape: f32[10,1], index: 14, kind: input, shape index: {}]
  %s15 = inlined_call_operand.vmem [shape: f32[1,10,256], index: 15, kind: output, shape index: {}]
  %s16 = sld [smem:[#allocation0]]
  $region70: #{_lambda_.1} parent=0
    _
  %s18 = ssub.s32 1, %s16
  %s19 = scalar_select 0, %s18, %s16
  // Predicated region
  $region2: #{_lambda_.1} parent=0 // pred_check
    _
  $region3: #{_lambda_.1} parent=0 // pred_check_branch
    %21 = sbr.rel (0) target = $region5
  $region4: #{_lambda_.1} parent=0 // pred_region
    _
  $region5: #{_lambda_.1} parent=0 // pred_fallthru
    _
  // Predicated region
  $region6: #{_lambda_.1} parent=0 // pred_check
    _
  $region7: #{_lambda_.1} parent=0 // pred_check_branch
    %23 = sbr.rel (0) target = $region9
  $region8: #{_lambda_.1} parent=0 // pred_region
    _
  $region9: #{_lambda_.1} parent=0 // pred_fallthru
    _
  // Predicated region
  $region10: #{_lambda_.1} parent=0 // pred_check
    _
  $region11: #{_lambda_.1} parent=0 // pred_check_branch
    %25 = sbr.rel (0) target = $region13
  $region12: #{_lambda_.1} parent=0 // pred_region
    _
  $region13: #{_lambda_.1} parent=0 // pred_fallthru
    _
  // Predicated region
  $region14: #{_lambda_.1} parent=0 // pred_check
    _
  $region15: #{_lambda_.1} parent=0 // pred_check_branch
    %27 = sbr.rel (0) target = $region17
  $region16: #{_lambda_.1} parent=0 // pred_region
    _
  $region17: #{_lambda_.1} parent=0 // pred_fallthru
    _
  // Predicated region
  $region18: #{_lambda_.1} parent=0 // pred_check
    _
  $region19: #{_lambda_.1} parent=0 // pred_check_branch
    %29 = sbr.rel (0) target = $region21
  $region20: #{_lambda_.1} parent=0 // pred_region
    _
  $region21: #{_lambda_.1} parent=0 // pred_fallthru
    _
  // Predicated region
  $region22: #{_lambda_.1} parent=0 // pred_check
    _
  $region23: #{_lambda_.1} parent=0 // pred_check_branch
    %31 = sbr.rel (0) target = $region25
  $region24: #{_lambda_.1} parent=0 // pred_region
    _
  $region25: #{_lambda_.1} parent=0 // pred_fallthru
    _
  // Predicated region
  $region26: #{_lambda_.1} parent=0 // pred_check
    _
  $region27: #{_lambda_.1} parent=0 // pred_check_branch
    %33 = sbr.rel (0) target = $region29
  $region28: #{_lambda_.1} parent=0 // pred_region
    _
  $region29: #{_lambda_.1} parent=0 // pred_fallthru
    _
  // Predicated region
  $region30: #{_lambda_.1} parent=0 // pred_check
    _
  $region31: #{_lambda_.1} parent=0 // pred_check_branch
    %35 = sbr.rel (0) target = $region33
  $region32: #{_lambda_.1} parent=0 // pred_region
    _
  $region33: #{_lambda_.1} parent=0 // pred_fallthru
    _
  // Predicated region
  $region34: #{_lambda_.1} parent=0 // pred_check
    _
  $region35: #{_lambda_.1} parent=0 // pred_check_branch
    %37 = sbr.rel (0) target = $region37
  $region36: #{_lambda_.1} parent=0 // pred_region
    _
  $region37: #{_lambda_.1} parent=0 // pred_fallthru
    _
  // Predicated region
  $region38: #{_lambda_.1} parent=0 // pred_check
    _
  $region39: #{_lambda_.1} parent=0 // pred_check_branch
    %39 = sbr.rel (0) target = $region41
  $region40: #{_lambda_.1} parent=0 // pred_region
    _
  $region41: #{_lambda_.1} parent=0 // pred_fallthru
    _
  // Predicated region
  $region42: #{_lambda_.1} parent=0 // pred_check
    _
  $region43: #{_lambda_.1} parent=0 // pred_check_branch
    %41 = sbr.rel (0) target = $region45
  $region44: #{_lambda_.1} parent=0 // pred_region
    _
  $region45: #{_lambda_.1} parent=0 // pred_fallthru
    _
  // Predicated region
  $region46: #{_lambda_.1} parent=0 // pred_check
    _
  $region47: #{_lambda_.1} parent=0 // pred_check_branch
    %43 = sbr.rel (0) target = $region49
  $region48: #{_lambda_.1} parent=0 // pred_region
    _
  $region49: #{_lambda_.1} parent=0 // pred_fallthru
    _
  // Predicated region
  $region50: #{_lambda_.1} parent=0 // pred_check
    _
  $region51: #{_lambda_.1} parent=0 // pred_check_branch
    %45 = sbr.rel (0) target = $region53
  $region52: #{_lambda_.1} parent=0 // pred_region
    _
  $region53: #{_lambda_.1} parent=0 // pred_fallthru
    _
  // Predicated region
  $region54: #{_lambda_.1} parent=0 // pred_check
    _
  $region55: #{_lambda_.1} parent=0 // pred_check_branch
    %47 = sbr.rel (0) target = $region57
  $region56: #{_lambda_.1} parent=0 // pred_region
    _
  $region57: #{_lambda_.1} parent=0 // pred_fallthru
    _
  // Predicated region
  $region58: #{_lambda_.1} parent=0 // pred_check
    _
  $region59: #{_lambda_.1} parent=0 // pred_check_branch
    %49 = sbr.rel (0) target = $region61
  $region60: #{_lambda_.1} parent=0 // pred_region
    _
  $region61: #{_lambda_.1} parent=0 // pred_fallthru
    _
  %v51 = vlaneseq
  %v52 = vand.u32 %v51, 127
  %vm53 = vcmp.lt.s32.totalorder %v52, 32
  %v54 = vsel %vm53, 1, 0
  %v55 = vcvt.s32.f32 %v54
  %v56 = vld [vmem:[%s0] sm:$0xff]
  %v57 = vld [vmem:[%s0 + $0x8] sm:$0xff]
  %v58 = vld [vmem:[%s0 + $0x10] sm:$0xff]
  %v59 = vld [vmem:[%s0 + $0x18] sm:$0xff]
  %v60 = vld [vmem:[%s1] sm:$0xff]
  %v61 = vld [vmem:[%s1 + $0x8] sm:$0xff]
  %v62 = vld [vmem:[%s1 + $0x10] sm:$0xff]
  %v63 = vld [vmem:[%s1 + $0x18] sm:$0xff]
  %v64 = vld [vmem:[%s1 + $0x20] sm:$0xff]
  %v65 = vld [vmem:[%s1 + $0x28] sm:$0xff]
  %v66 = vld [vmem:[%s1 + $0x30] sm:$0xff]
  %v67 = vld [vmem:[%s1 + $0x38] sm:$0xff]
  %v68 = vld [vmem:[%s2] sm:$0xff]
  %v69 = vld [vmem:[%s2 + $0x8] sm:$0xff]
  %v70 = vld [vmem:[%s2 + $0x10] sm:$0xff]
  %v71 = vld [vmem:[%s2 + $0x18] sm:$0xff]
  %v72 = vld [vmem:[%s2 + $0x20] sm:$0xff]
  %v73 = vld [vmem:[%s2 + $0x28] sm:$0xff]
  %v74 = vld [vmem:[%s2 + $0x30] sm:$0xff]
  %v75 = vld [vmem:[%s2 + $0x38] sm:$0xff]
  %76 = vrot.lane.b32.xlu0 %v56, 1
  %v77 = vpop.permute.xlu0 %76
  %78 = vrot.lane.b32.xlu0 %v58, 1
  %v79 = vpop.permute.xlu0 %78
  %80 = vrot.lane.b32.xlu0 %v57, 1
  %v81 = vpop.permute.xlu0 %80
  %82 = vrot.lane.b32.xlu0 %v59, 1
  %v83 = vpop.permute.xlu0 %82
  %vm84 = vcmp.lt.s32.totalorder %v52, 1
  %v85 = vsel %vm84, %v77, %v81
  %v86 = vsel %vm84, %v79, %v83
  %v87 = vsel %vm84, %v81, %v77
  %v88 = vsel %vm84, %v83, %v79
  %89 = vrot.lane.b32.xlu0 %v56, 127
  %v90 = vpop.permute.xlu0 %89
  %91 = vrot.lane.b32.xlu0 %v58, 127
  %v92 = vpop.permute.xlu0 %91
  %93 = vrot.lane.b32.xlu0 %v57, 127
  %v94 = vpop.permute.xlu0 %93
  %95 = vrot.lane.b32.xlu0 %v59, 127
  %v96 = vpop.permute.xlu0 %95
  %vm97 = vcmp.lt.s32.totalorder %v52, 127
  %v98 = vsel %vm97, %v90, %v94
  %v99 = vsel %vm97, %v92, %v96
  %v100 = vsel %vm97, %v94, %v90
  %v101 = vsel %vm97, %v96, %v92
  %103 = vset.pattern.permute.xlu0 0
  %104 = vperm.xlu0 %103, %v68
  %v105 = vpop.permute.xlu0 %104
  %108 = vset.pattern.permute.xlu0 0
  %109 = vperm.xlu0 %108, %v69
  %v110 = vpop.permute.xlu0 %109
  %113 = vset.pattern.permute.xlu0 0
  %114 = vperm.xlu0 %113, %v70
  %v115 = vpop.permute.xlu0 %114
  %118 = vset.pattern.permute.xlu0 0
  %119 = vperm.xlu0 %118, %v71
  %v120 = vpop.permute.xlu0 %119
  %123 = vset.pattern.permute.xlu0 0
  %124 = vperm.xlu0 %123, %v72
  %v125 = vpop.permute.xlu0 %124
  %128 = vset.pattern.permute.xlu0 0
  %129 = vperm.xlu0 %128, %v73
  %v130 = vpop.permute.xlu0 %129
  %133 = vset.pattern.permute.xlu0 0
  %134 = vperm.xlu0 %133, %v74
  %v135 = vpop.permute.xlu0 %134
  %138 = vset.pattern.permute.xlu0 0
  %139 = vperm.xlu0 %138, %v75
  %v140 = vpop.permute.xlu0 %139
  %vm142 = vcmask 392192
  %v144 = vsel %vm142, %v60, 0
  %v147 = vsel %vm142, %v61, 0
  %v150 = vsel %vm142, %v62, 0
  %v153 = vsel %vm142, %v63, 0
  %v156 = vsel %vm142, %v64, 0
  %v159 = vsel %vm142, %v65, 0
  %v162 = vsel %vm142, %v66, 0
  %v165 = vsel %vm142, %v67, 0
  %167 = vmatprep.subr.mxu0 %v85
  %168 = vmatpush1.msra.mxu0 %v87
  %169 = vmatprep.subr.mxu0 %v86
  %170 = vmatpush1.msra.mxu0 %v88
  %171 = vmatprep.subr.mxu0 %v57
  %172 = vmatpush1.msra.mxu0 %v56
  %173 = vmatprep.subr.mxu0 %v59
  %174 = vmatpush1.msra.mxu0 %v58
  %175 = vmatprep.subr.mxu0 %v100
  %176 = vmatpush1.msra.mxu0 %v98
  %177 = vmatprep.subr.mxu0 %v101
  %178 = vmatpush1.msra.mxu0 %v99
  %179 = vmatprep.subr.mxu0 0.0
  %180 = vmatpush1.msra.mxu0 0.0
  %181 = vmatprep.subr.mxu0 0.0
  %182 = vmatpush1.msra.mxu0 0.0
  %183 = vmatprep.subr.mxu0 0.0
  %184 = vmatpush1.msra.mxu0 0.0
  %185 = vmatprep.subr.mxu0 0.0
  %186 = vmatpush1.msra.mxu0 0.0
  %187 = vmatprep.subr.mxu0 0.0
  %188 = vmatpush1.msra.mxu0 0.0
  %189 = vmatprep.subr.mxu0 0.0
  %190 = vmatpush1.msra.mxu0 0.0
  %191 = vmatprep.subr.mxu0 0.0
  %192 = vmatpush1.msra.mxu0 0.0
  %193 = vmatprep.subr.mxu0 0.0
  %194 = vmatpush1.msra.mxu0 0.0
  %195 = vmatprep.subr.mxu0 0.0
  %196 = vmatpush1.msra.mxu0 0.0
  %197 = vmatprep.subr.mxu0 0.0
  %198 = vmatpush1.msra.mxu0 0.0
  %199 = vmatprep.subr.mxu0 0.0
  %200 = vmatpush1.msra.mxu0 0.0
  %201 = vmatprep.subr.mxu0 0.0
  %202 = vmatpush1.msra.mxu0 0.0
  %203 = vmatprep.subr.mxu0 0.0
  %204 = vmatpush1.msra.mxu0 0.0
  %205 = vmatprep.subr.mxu0 0.0
  %206 = vmatpush1.msra.mxu0 0.0
  %207 = vmatprep.subr.mxu0 0.0
  %208 = vmatpush1.msra.mxu0 0.0
  %209 = vmatprep.subr.mxu0 0.0
  %210 = vmatpush1.msra.mxu0 0.0
  %211 = vmatprep.subr.mxu0 0.0
  %212 = vmatpush1.msra.mxu0 0.0
  %213 = vmatprep.subr.mxu0 0.0
  %214 = vmatpush1.msra.mxu0 0.0
  %215 = vmatprep.subr.mxu0 0.0
  %216 = vmatpush1.msra.mxu0 0.0
  %217 = vmatprep.subr.mxu0 0.0
  %218 = vmatpush1.msra.mxu0 0.0
  %219 = vmatprep.subr.mxu0 0.0
  %220 = vmatpush1.msra.mxu0 0.0
  %221 = vmatprep.subr.mxu0 0.0
  %222 = vmatpush1.msra.mxu0 0.0
  %223 = vmatprep.subr.mxu0 0.0
  %224 = vmatpush1.msra.mxu0 0.0
  %225 = vmatprep.subr.mxu0 0.0
  %226 = vmatpush1.msra.mxu0 0.0
  %227 = vmatprep.subr.mxu0 0.0
  %228 = vmatpush1.msra.mxu0 0.0
  %229 = vmatprep.subr.mxu0 0.0
  %230 = vmatpush1.msra.mxu0 0.0
  %231 = vmatprep.mubr.f32.mxu0 0.0
  %232 = vmatmul.mubr.f32.gmra.mrb[0].mxu0 %v144
  %v233 = vpop.f32.mrb[0].mxu0
  %v234 = vadd.f32 %v105, %v233
  %v235 = vpop.f32.mrb[0].mxu0
  %v236 = vadd.f32 %v105, %v235
  %237 = vmatprep.mubr.f32.mxu0 0.0
  %238 = vmatmul.mubr.f32.gmra.mrb[0].mxu0 %v147
  %v239 = vpop.f32.mrb[0].mxu0
  %v240 = vadd.f32 %v110, %v239
  %v241 = vpop.f32.mrb[0].mxu0
  %v242 = vadd.f32 %v110, %v241
  %243 = vmatprep.mubr.f32.mxu0 0.0
  %244 = vmatmul.mubr.f32.gmra.mrb[0].mxu0 %v150
  %v245 = vpop.f32.mrb[0].mxu0
  %v246 = vadd.f32 %v115, %v245
  %v247 = vpop.f32.mrb[0].mxu0
  %v248 = vadd.f32 %v115, %v247
  %249 = vmatprep.mubr.f32.mxu0 0.0
  %250 = vmatmul.mubr.f32.gmra.mrb[0].mxu0 %v153
  %v251 = vpop.f32.mrb[0].mxu0
  %v252 = vadd.f32 %v120, %v251
  %v253 = vpop.f32.mrb[0].mxu0
  %v254 = vadd.f32 %v120, %v253
  %255 = vmatprep.mubr.f32.mxu0 0.0
  %256 = vmatmul.mubr.f32.gmra.mrb[0].mxu0 %v156
  %v257 = vpop.f32.mrb[0].mxu0
  %v258 = vadd.f32 %v125, %v257
  %v259 = vpop.f32.mrb[0].mxu0
  %v260 = vadd.f32 %v125, %v259
  %261 = vmatprep.mubr.f32.mxu0 0.0
  %262 = vmatmul.mubr.f32.gmra.mrb[0].mxu0 %v159
  %v263 = vpop.f32.mrb[0].mxu0
  %v264 = vadd.f32 %v130, %v263
  %v265 = vpop.f32.mrb[0].mxu0
  %v266 = vadd.f32 %v130, %v265
  %267 = vmatprep.mubr.f32.mxu0 0.0
  %268 = vmatmul.mubr.f32.gmra.mrb[0].mxu0 %v162
  %v269 = vpop.f32.mrb[0].mxu0
  %v270 = vadd.f32 %v135, %v269
  %v271 = vpop.f32.mrb[0].mxu0
  %v272 = vadd.f32 %v135, %v271
  %273 = vmatprep.mubr.f32.mxu0 0.0
  %274 = vmatmul.mubr.f32.gmra.mrb[0].mxu0 %v165
  %v275 = vpop.f32.mrb[0].mxu0
  %v276 = vadd.f32 %v140, %v275
  %v277 = vpop.f32.mrb[0].mxu0
  %v278 = vadd.f32 %v140, %v277
  %279 = vdwg.mxu0
  %v280 = vmax.f32 %v234, 0.0
  %v281 = vmax.f32 %v236, 0.0
  %v282 = vmax.f32 %v240, 0.0
  %v283 = vmax.f32 %v242, 0.0
  %v284 = vmax.f32 %v246, 0.0
  %v285 = vmax.f32 %v248, 0.0
  %v286 = vmax.f32 %v252, 0.0
  %v287 = vmax.f32 %v254, 0.0
  %v288 = vld [vmem:[%s3] sm:$0xf]
  %v289 = vld [vmem:[%s3 + $0x4] sm:$0xf]
  %v290 = vld [vmem:[%s3 + $0x8] sm:$0xf]
  %v291 = vld [vmem:[%s3 + $0xc] sm:$0xf]
  %v292 = vld [vmem:[%s4] sm:$0xff]
  %v293 = vld [vmem:[%s4 + $0x8] sm:$0xff]
  %v294 = vld [vmem:[%s4 + $0x10] sm:$0xff]
  %v295 = vld [vmem:[%s4 + $0x18] sm:$0xff]
  %v296 = vlaneseq
  %v297 = vshrl.u32 %v296, 7
  %v298 = vsub.s32 0, %v297
  %v299 = vrot.slane %v55, %v298
  %v300 = vmul.f32 %v280, %v299
  %v301 = vmul.f32 %v281, %v299
  %v302 = vmul.f32 %v282, %v299
  %v303 = vmul.f32 %v283, %v299
  %v304 = vmul.f32 %v284, %v299
  %v305 = vmul.f32 %v285, %v299
  %v306 = vmul.f32 %v286, %v299
  %v307 = vmul.f32 %v287, %v299
  %308 = vrot.lane.b32.xlu0 %v300, 1
  %v309 = vpop.permute.xlu0 %308
  %310 = vrot.lane.b32.xlu0 %v302, 1
  %v311 = vpop.permute.xlu0 %310
  %312 = vrot.lane.b32.xlu0 %v304, 1
  %v313 = vpop.permute.xlu0 %312
  %314 = vrot.lane.b32.xlu0 %v306, 1
  %v315 = vpop.permute.xlu0 %314
  %316 = vrot.lane.b32.xlu0 %v301, 1
  %v317 = vpop.permute.xlu0 %316
  %318 = vrot.lane.b32.xlu0 %v303, 1
  %v319 = vpop.permute.xlu0 %318
  %320 = vrot.lane.b32.xlu0 %v305, 1
  %v321 = vpop.permute.xlu0 %320
  %322 = vrot.lane.b32.xlu0 %v307, 1
  %v323 = vpop.permute.xlu0 %322
  %v324 = vsel %vm84, %v309, %v317
  %v325 = vsel %vm84, %v311, %v319
  %v326 = vsel %vm84, %v313, %v321
  %v327 = vsel %vm84, %v315, %v323
  %v328 = vsel %vm84, %v317, %v309
  %v329 = vsel %vm84, %v319, %v311
  %v330 = vsel %vm84, %v321, %v313
  %v331 = vsel %vm84, %v323, %v315
  %332 = vrot.lane.b32.xlu0 %v300, 127
  %v333 = vpop.permute.xlu0 %332
  %334 = vrot.lane.b32.xlu0 %v302, 127
  %v335 = vpop.permute.xlu0 %334
  %336 = vrot.lane.b32.xlu0 %v304, 127
  %v337 = vpop.permute.xlu0 %336
  %338 = vrot.lane.b32.xlu0 %v306, 127
  %v339 = vpop.permute.xlu0 %338
  %340 = vrot.lane.b32.xlu0 %v301, 127
  %v341 = vpop.permute.xlu0 %340
  %342 = vrot.lane.b32.xlu0 %v303, 127
  %v343 = vpop.permute.xlu0 %342
  %344 = vrot.lane.b32.xlu0 %v305, 127
  %v345 = vpop.permute.xlu0 %344
  %346 = vrot.lane.b32.xlu0 %v307, 127
  %v347 = vpop.permute.xlu0 %346
  %v348 = vsel %vm97, %v333, %v341
  %v349 = vsel %vm97, %v335, %v343
  %v350 = vsel %vm97, %v337, %v345
  %v351 = vsel %vm97, %v339, %v347
  %v352 = vsel %vm97, %v341, %v333
  %v353 = vsel %vm97, %v343, %v335
  %v354 = vsel %vm97, %v345, %v337
  %v355 = vsel %vm97, %v347, %v339
  %v356 = vpack.c.bf16 %v329, %v328
  %v357 = vpack.c.bf16 %v325, %v324
  %v358 = vpack.c.bf16 %v331, %v330
  %v359 = vpack.c.bf16 %v327, %v326
  %v360 = vpack.c.bf16 %v302, %v300
  %v361 = vpack.c.bf16 %v303, %v301
  %v362 = vpack.c.bf16 %v306, %v304
  %v363 = vpack.c.bf16 %v307, %v305
  %v364 = vpack.c.bf16 %v349, %v348
  %v365 = vpack.c.bf16 %v353, %v352
  %v366 = vpack.c.bf16 %v351, %v350
  %v367 = vpack.c.bf16 %v355, %v354
  %369 = vset.pattern.permute.xlu0 0
  %370 = vperm.xlu0 %369, %v292
  %v371 = vpop.permute.xlu0 %370
  %374 = vset.pattern.permute.xlu0 0
  %375 = vperm.xlu0 %374, %v293
  %v376 = vpop.permute.xlu0 %375
  %379 = vset.pattern.permute.xlu0 0
  %380 = vperm.xlu0 %379, %v294
  %v381 = vpop.permute.xlu0 %380
  %384 = vset.pattern.permute.xlu0 0
  %385 = vperm.xlu0 %384, %v295
  %v386 = vpop.permute.xlu0 %385
  %v392 = vunpack.c.l.b16 %v288
  %v393 = vunpack.c.l.b16 %v289
  %v394 = vunpack.c.l.b16 %v290
  %v395 = vunpack.c.l.b16 %v291
  %v396 = vpack.c.b16 %v393, %v392
  %v397 = vpack.c.b16 %v395, %v394
  %vm398 = vcmask 785408
  %v400 = vsel %vm398, %v396, 0
  %v403 = vsel %vm398, %v397, 0
  %405 = vmatprep.subr.bf16.mxu0 %v357
  %406 = vmatpush1.bf16.msra.mxu0 %v356
  %407 = vmatprep.subr.bf16.mxu0 %v359
  %408 = vmatpush1.bf16.msra.mxu0 %v358
  %409 = vmatprep.subr.bf16.mxu0 %v361
  %410 = vmatpush1.bf16.msra.mxu0 %v360
  %411 = vmatprep.subr.bf16.mxu0 %v363
  %412 = vmatpush1.bf16.msra.mxu0 %v362
  %413 = vmatprep.subr.bf16.mxu0 %v365
  %414 = vmatpush1.bf16.msra.mxu0 %v364
  %415 = vmatprep.subr.bf16.mxu0 %v367
  %416 = vmatpush1.bf16.msra.mxu0 %v366
  %417 = vmatprep.subr.bf16.mxu0 0
  %418 = vmatpush1.bf16.msra.mxu0 0
  %419 = vmatprep.subr.bf16.mxu0 0
  %420 = vmatpush1.bf16.msra.mxu0 0
  %421 = vmatprep.subr.bf16.mxu0 0
  %422 = vmatpush1.bf16.msra.mxu0 0
  %423 = vmatprep.subr.bf16.mxu0 0
  %424 = vmatpush1.bf16.msra.mxu0 0
  %425 = vmatprep.subr.bf16.mxu0 0
  %426 = vmatpush1.bf16.msra.mxu0 0
  %427 = vmatprep.subr.bf16.mxu0 0
  %428 = vmatpush1.bf16.msra.mxu0 0
  %429 = vmatprep.subr.bf16.mxu0 0
  %430 = vmatpush1.bf16.msra.mxu0 0
  %431 = vmatprep.subr.bf16.mxu0 0
  %432 = vmatpush1.bf16.msra.mxu0 0
  %433 = vmatprep.subr.bf16.mxu0 0
  %434 = vmatpush1.bf16.msra.mxu0 0
  %435 = vmatprep.subr.bf16.mxu0 0
  %436 = vmatpush1.bf16.msra.mxu0 0
  %437 = vmatprep.mubr.bf16.mxu0 0
  %438 = vmatmul.mubr.bf16.gmra.mrb[0].mxu0 %v400
  %v439 = vpop.f32.mrb[0].mxu0
  %v440 = vadd.f32 %v371, %v439
  %v441 = vpop.f32.mrb[0].mxu0
  %v442 = vadd.f32 %v371, %v441
  %v443 = vpop.f32.mrb[0].mxu0
  %v444 = vadd.f32 %v376, %v443
  %v445 = vpop.f32.mrb[0].mxu0
  %v446 = vadd.f32 %v376, %v445
  %447 = vmatprep.mubr.bf16.mxu0 0
  %448 = vmatmul.mubr.bf16.gmra.mrb[0].mxu0 %v403
  %v449 = vpop.f32.mrb[0].mxu0
  %v450 = vadd.f32 %v381, %v449
  %v451 = vpop.f32.mrb[0].mxu0
  %v452 = vadd.f32 %v381, %v451
  %v453 = vpop.f32.mrb[0].mxu0
  %v454 = vadd.f32 %v386, %v453
  %v455 = vpop.f32.mrb[0].mxu0
  %v456 = vadd.f32 %v386, %v455
  %457 = vdwg.mxu0
  %v458 = vadd.f32 %v440, %v258
  %v459 = vadd.f32 %v442, %v260
  %v460 = vadd.f32 %v444, %v264
  %v461 = vadd.f32 %v446, %v266
  %v462 = vadd.f32 %v450, %v270
  %v463 = vadd.f32 %v452, %v272
  %v464 = vadd.f32 %v454, %v276
  %v465 = vadd.f32 %v456, %v278
  %v466 = vmax.f32 %v458, 0.0
  %v467 = vmax.f32 %v459, 0.0
  %v468 = vmax.f32 %v460, 0.0
  %v469 = vmax.f32 %v461, 0.0
  %v470 = vmax.f32 %v462, 0.0
  %v471 = vmax.f32 %v463, 0.0
  %v472 = vmax.f32 %v464, 0.0
  %v473 = vmax.f32 %v465, 0.0
  %v474 = vld [vmem:[%s5] sm:$0xff]
  %v475 = vld [vmem:[%s5 + $0x8] sm:$0xff]
  %v476 = vld [vmem:[%s5 + $0x10] sm:$0xff]
  %v477 = vld [vmem:[%s5 + $0x18] sm:$0xff]
  %v478 = vld [vmem:[%s5 + $0x20] sm:$0xff]
  %v479 = vld [vmem:[%s5 + $0x28] sm:$0xff]
  %v480 = vld [vmem:[%s5 + $0x30] sm:$0xff]
  %v481 = vld [vmem:[%s5 + $0x38] sm:$0xff]
  %v482 = vld [vmem:[%s6] sm:$0xff]
  %v483 = vld [vmem:[%s6 + $0x8] sm:$0xff]
  %v484 = vld [vmem:[%s6 + $0x10] sm:$0xff]
  %v485 = vld [vmem:[%s6 + $0x18] sm:$0xff]
  %v486 = vld [vmem:[%s6 + $0x20] sm:$0xff]
  %v487 = vld [vmem:[%s6 + $0x28] sm:$0xff]
  %v488 = vld [vmem:[%s6 + $0x30] sm:$0xff]
  %v489 = vld [vmem:[%s6 + $0x38] sm:$0xff]
  %v490 = vmul.f32 %v466, %v299
  %v491 = vmul.f32 %v467, %v299
  %v492 = vmul.f32 %v468, %v299
  %v493 = vmul.f32 %v469, %v299
  %v494 = vmul.f32 %v470, %v299
  %v495 = vmul.f32 %v471, %v299
  %v496 = vmul.f32 %v472, %v299
  %v497 = vmul.f32 %v473, %v299
  %498 = vrot.lane.b32.xlu0 %v490, 2
  %v499 = vpop.permute.xlu0 %498
  %500 = vrot.lane.b32.xlu0 %v492, 2
  %v501 = vpop.permute.xlu0 %500
  %502 = vrot.lane.b32.xlu0 %v494, 2
  %v503 = vpop.permute.xlu0 %502
  %504 = vrot.lane.b32.xlu0 %v496, 2
  %v505 = vpop.permute.xlu0 %504
  %506 = vrot.lane.b32.xlu0 %v491, 2
  %v507 = vpop.permute.xlu0 %506
  %508 = vrot.lane.b32.xlu0 %v493, 2
  %v509 = vpop.permute.xlu0 %508
  %510 = vrot.lane.b32.xlu0 %v495, 2
  %v511 = vpop.permute.xlu0 %510
  %512 = vrot.lane.b32.xlu0 %v497, 2
  %v513 = vpop.permute.xlu0 %512
  %vm514 = vcmp.lt.s32.totalorder %v52, 2
  %v515 = vsel %vm514, %v499, %v507
  %v516 = vsel %vm514, %v501, %v509
  %v517 = vsel %vm514, %v503, %v511
  %v518 = vsel %vm514, %v505, %v513
  %v519 = vsel %vm514, %v507, %v499
  %v520 = vsel %vm514, %v509, %v501
  %v521 = vsel %vm514, %v511, %v503
  %v522 = vsel %vm514, %v513, %v505
  %523 = vrot.lane.b32.xlu0 %v490, 1
  %v524 = vpop.permute.xlu0 %523
  %525 = vrot.lane.b32.xlu0 %v492, 1
  %v526 = vpop.permute.xlu0 %525
  %527 = vrot.lane.b32.xlu0 %v494, 1
  %v528 = vpop.permute.xlu0 %527
  %529 = vrot.lane.b32.xlu0 %v496, 1
  %v530 = vpop.permute.xlu0 %529
  %531 = vrot.lane.b32.xlu0 %v491, 1
  %v532 = vpop.permute.xlu0 %531
  %533 = vrot.lane.b32.xlu0 %v493, 1
  %v534 = vpop.permute.xlu0 %533
  %535 = vrot.lane.b32.xlu0 %v495, 1
  %v536 = vpop.permute.xlu0 %535
  %537 = vrot.lane.b32.xlu0 %v497, 1
  %v538 = vpop.permute.xlu0 %537
  %v539 = vsel %vm84, %v524, %v532
  %v540 = vsel %vm84, %v526, %v534
  %v541 = vsel %vm84, %v528, %v536
  %v542 = vsel %vm84, %v530, %v538
  %v543 = vsel %vm84, %v532, %v524
  %v544 = vsel %vm84, %v534, %v526
  %v545 = vsel %vm84, %v536, %v528
  %v546 = vsel %vm84, %v538, %v530
  %547 = vrot.lane.b32.xlu0 %v490, 127
  %v548 = vpop.permute.xlu0 %547
  %549 = vrot.lane.b32.xlu0 %v492, 127
  %v550 = vpop.permute.xlu0 %549
  %551 = vrot.lane.b32.xlu0 %v494, 127
  %v552 = vpop.permute.xlu0 %551
  %553 = vrot.lane.b32.xlu0 %v496, 127
  %v554 = vpop.permute.xlu0 %553
  %555 = vrot.lane.b32.xlu0 %v491, 127
  %v556 = vpop.permute.xlu0 %555
  %557 = vrot.lane.b32.xlu0 %v493, 127
  %v558 = vpop.permute.xlu0 %557
  %559 = vrot.lane.b32.xlu0 %v495, 127
  %v560 = vpop.permute.xlu0 %559
  %561 = vrot.lane.b32.xlu0 %v497, 127
  %v562 = vpop.permute.xlu0 %561
  %v563 = vsel %vm97, %v548, %v556
  %v564 = vsel %vm97, %v550, %v558
  %v565 = vsel %vm97, %v552, %v560
  %v566 = vsel %vm97, %v554, %v562
  %v567 = vsel %vm97, %v556, %v548
  %v568 = vsel %vm97, %v558, %v550
  %v569 = vsel %vm97, %v560, %v552
  %v570 = vsel %vm97, %v562, %v554
  %571 = vrot.lane.b32.xlu0 %v490, 126
  %v572 = vpop.permute.xlu0 %571
  %573 = vrot.lane.b32.xlu0 %v492, 126
  %v574 = vpop.permute.xlu0 %573
  %575 = vrot.lane.b32.xlu0 %v494, 126
  %v576 = vpop.permute.xlu0 %575
  %577 = vrot.lane.b32.xlu0 %v496, 126
  %v578 = vpop.permute.xlu0 %577
  %579 = vrot.lane.b32.xlu0 %v491, 126
  %v580 = vpop.permute.xlu0 %579
  %581 = vrot.lane.b32.xlu0 %v493, 126
  %v582 = vpop.permute.xlu0 %581
  %583 = vrot.lane.b32.xlu0 %v495, 126
  %v584 = vpop.permute.xlu0 %583
  %585 = vrot.lane.b32.xlu0 %v497, 126
  %v586 = vpop.permute.xlu0 %585
  %vm587 = vcmp.lt.s32.totalorder %v52, 126
  %v588 = vsel %vm587, %v572, %v580
  %v589 = vsel %vm587, %v574, %v582
  %v590 = vsel %vm587, %v576, %v584
  %v591 = vsel %vm587, %v578, %v586
  %v592 = vsel %vm587, %v580, %v572
  %v593 = vsel %vm587, %v582, %v574
  %v594 = vsel %vm587, %v584, %v576
  %v595 = vsel %vm587, %v586, %v578
  %v596 = vpack.c.bf16 %v520, %v519
  %v597 = vpack.c.bf16 %v516, %v515
  %v598 = vpack.c.bf16 %v522, %v521
  %v599 = vpack.c.bf16 %v518, %v517
  %v600 = vpack.c.bf16 %v544, %v543
  %v601 = vpack.c.bf16 %v540, %v539
  %v602 = vpack.c.bf16 %v546, %v545
  %v603 = vpack.c.bf16 %v542, %v541
  %v604 = vpack.c.bf16 %v492, %v490
  %v605 = vpack.c.bf16 %v493, %v491
  %v606 = vpack.c.bf16 %v496, %v494
  %v607 = vpack.c.bf16 %v497, %v495
  %v608 = vpack.c.bf16 %v564, %v563
  %v609 = vpack.c.bf16 %v568, %v567
  %v610 = vpack.c.bf16 %v566, %v565
  %v611 = vpack.c.bf16 %v570, %v569
  %v612 = vpack.c.bf16 %v589, %v588
  %v613 = vpack.c.bf16 %v593, %v592
  %v614 = vpack.c.bf16 %v591, %v590
  %v615 = vpack.c.bf16 %v595, %v594
  %617 = vset.pattern.permute.xlu0 0
  %618 = vperm.xlu0 %617, %v482
  %v619 = vpop.permute.xlu0 %618
  %622 = vset.pattern.permute.xlu0 0
  %623 = vperm.xlu0 %622, %v483
  %v624 = vpop.permute.xlu0 %623
  %627 = vset.pattern.permute.xlu0 0
  %628 = vperm.xlu0 %627, %v484
  %v629 = vpop.permute.xlu0 %628
  %632 = vset.pattern.permute.xlu0 0
  %633 = vperm.xlu0 %632, %v485
  %v634 = vpop.permute.xlu0 %633
  %637 = vset.pattern.permute.xlu0 0
  %638 = vperm.xlu0 %637, %v486
  %v639 = vpop.permute.xlu0 %638
  %642 = vset.pattern.permute.xlu0 0
  %643 = vperm.xlu0 %642, %v487
  %v644 = vpop.permute.xlu0 %643
  %647 = vset.pattern.permute.xlu0 0
  %648 = vperm.xlu0 %647, %v488
  %v649 = vpop.permute.xlu0 %648
  %652 = vset.pattern.permute.xlu0 0
  %653 = vperm.xlu0 %652, %v489
  %v654 = vpop.permute.xlu0 %653
  %v664 = vunpack.c.l.b16 %v474
  %v665 = vunpack.c.h.b16 %v474
  %v666 = vunpack.c.l.b16 %v475
  %v667 = vunpack.c.h.b16 %v475
  %v668 = vunpack.c.l.b16 %v476
  %v669 = vunpack.c.h.b16 %v476
  %v670 = vunpack.c.l.b16 %v477
  %v671 = vunpack.c.h.b16 %v477
  %v672 = vunpack.c.l.b16 %v478
  %v673 = vunpack.c.h.b16 %v478
  %v674 = vunpack.c.l.b16 %v479
  %v675 = vunpack.c.h.b16 %v479
  %v676 = vunpack.c.l.b16 %v480
  %v677 = vunpack.c.h.b16 %v480
  %v678 = vunpack.c.l.b16 %v481
  %v679 = vunpack.c.h.b16 %v481
  %v680 = vpack.c.b16 %v666, %v664
  %v681 = vpack.c.b16 %v667, %v665
  %v682 = vpack.c.b16 %v670, %v668
  %v683 = vpack.c.b16 %v671, %v669
  %v684 = vpack.c.b16 %v674, %v672
  %v685 = vpack.c.b16 %v675, %v673
  %v686 = vpack.c.b16 %v678, %v676
  %v687 = vpack.c.b16 %v679, %v677
  %vm692 = vcmask 261120
  %v694 = vsel %vm692, %v681, 0
  %v697 = vsel %vm692, %v683, 0
  %v700 = vsel %vm692, %v685, 0
  %v703 = vsel %vm692, %v687, 0
  %705 = vmatprep.subr.bf16.mxu0 %v597
  %706 = vmatpush1.bf16.msra.mxu0 %v596
  %707 = vmatprep.subr.bf16.mxu0 %v599
  %708 = vmatpush1.bf16.msra.mxu0 %v598
  %709 = vmatprep.subr.bf16.mxu0 %v601
  %710 = vmatpush1.bf16.msra.mxu0 %v600
  %711 = vmatprep.subr.bf16.mxu0 %v603
  %712 = vmatpush1.bf16.msra.mxu0 %v602
  %713 = vmatprep.subr.bf16.mxu0 %v605
  %714 = vmatpush1.bf16.msra.mxu0 %v604
  %715 = vmatprep.subr.bf16.mxu0 %v607
  %716 = vmatpush1.bf16.msra.mxu0 %v606
  %717 = vmatprep.subr.bf16.mxu0 %v609
  %718 = vmatpush1.bf16.msra.mxu0 %v608
  %719 = vmatprep.subr.bf16.mxu0 %v611
  %720 = vmatpush1.bf16.msra.mxu0 %v610
  %721 = vmatprep.subr.bf16.mxu0 %v613
  %722 = vmatpush1.bf16.msra.mxu0 %v612
  %723 = vmatprep.subr.bf16.mxu0 %v615
  %724 = vmatpush1.bf16.msra.mxu0 %v614
  %725 = vmatprep.subr.bf16.mxu0 0
  %726 = vmatpush1.bf16.msra.mxu0 0
  %727 = vmatprep.subr.bf16.mxu0 0
  %728 = vmatpush1.bf16.msra.mxu0 0
  %729 = vmatprep.subr.bf16.mxu0 0
  %730 = vmatpush1.bf16.msra.mxu0 0
  %731 = vmatprep.subr.bf16.mxu0 0
  %732 = vmatpush1.bf16.msra.mxu0 0
  %733 = vmatprep.subr.bf16.mxu0 0
  %734 = vmatpush1.bf16.msra.mxu0 0
  %735 = vmatprep.subr.bf16.mxu0 0
  %736 = vmatpush1.bf16.msra.mxu0 0
  %737 = vmatprep.mubr.bf16.mxu0 %v694
  %738 = vmatmul.mubr.bf16.gmra.mrb[0].mxu0 %v680
  %v739 = vpop.f32.mrb[0].mxu0
  %v740 = vadd.f32 %v619, %v739
  %v741 = vpop.f32.mrb[0].mxu0
  %v742 = vadd.f32 %v619, %v741
  %v743 = vpop.f32.mrb[0].mxu0
  %v744 = vadd.f32 %v624, %v743
  %v745 = vpop.f32.mrb[0].mxu0
  %v746 = vadd.f32 %v624, %v745
  %747 = vmatprep.mubr.bf16.mxu0 %v697
  %748 = vmatmul.mubr.bf16.gmra.mrb[0].mxu0 %v682
  %v749 = vpop.f32.mrb[0].mxu0
  %v750 = vadd.f32 %v629, %v749
  %v751 = vpop.f32.mrb[0].mxu0
  %v752 = vadd.f32 %v629, %v751
  %v753 = vpop.f32.mrb[0].mxu0
  %v754 = vadd.f32 %v634, %v753
  %v755 = vpop.f32.mrb[0].mxu0
  %v756 = vadd.f32 %v634, %v755
  %757 = vmatprep.mubr.bf16.mxu0 %v700
  %758 = vmatmul.mubr.bf16.gmra.mrb[0].mxu0 %v684
  %v759 = vpop.f32.mrb[0].mxu0
  %v760 = vadd.f32 %v639, %v759
  %v761 = vpop.f32.mrb[0].mxu0
  %v762 = vadd.f32 %v639, %v761
  %v763 = vpop.f32.mrb[0].mxu0
  %v764 = vadd.f32 %v644, %v763
  %v765 = vpop.f32.mrb[0].mxu0
  %v766 = vadd.f32 %v644, %v765
  %767 = vmatprep.mubr.bf16.mxu0 %v703
  %768 = vmatmul.mubr.bf16.gmra.mrb[0].mxu0 %v686
  %v769 = vpop.f32.mrb[0].mxu0
  %v770 = vadd.f32 %v649, %v769
  %v771 = vpop.f32.mrb[0].mxu0
  %v772 = vadd.f32 %v649, %v771
  %v773 = vpop.f32.mrb[0].mxu0
  %v774 = vadd.f32 %v654, %v773
  %v775 = vpop.f32.mrb[0].mxu0
  %v776 = vadd.f32 %v654, %v775
  %777 = vdwg.mxu0
  %v778 = vmax.f32 %v740, 0.0
  %v779 = vmax.f32 %v742, 0.0
  %v780 = vmax.f32 %v744, 0.0
  %v781 = vmax.f32 %v746, 0.0
  %v782 = vmax.f32 %v750, 0.0
  %v783 = vmax.f32 %v752, 0.0
  %v784 = vmax.f32 %v754, 0.0
  %v785 = vmax.f32 %v756, 0.0
  %v786 = vld [vmem:[%s7] sm:$0xff]
  %v787 = vld [vmem:[%s7 + $0x8] sm:$0xff]
  %v788 = vld [vmem:[%s7 + $0x10] sm:$0xff]
  %v789 = vld [vmem:[%s7 + $0x18] sm:$0xff]
  %v790 = vld [vmem:[%s8] sm:$0xff]
  %v791 = vld [vmem:[%s8 + $0x8] sm:$0xff]
  %v792 = vld [vmem:[%s8 + $0x10] sm:$0xff]
  %v793 = vld [vmem:[%s8 + $0x18] sm:$0xff]
  %v794 = vmul.f32 %v778, %v299
  %v795 = vmul.f32 %v779, %v299
  %v796 = vmul.f32 %v780, %v299
  %v797 = vmul.f32 %v781, %v299
  %v798 = vmul.f32 %v782, %v299
  %v799 = vmul.f32 %v783, %v299
  %v800 = vmul.f32 %v784, %v299
  %v801 = vmul.f32 %v785, %v299
  %802 = vrot.lane.b32.xlu0 %v794, 2
  %v803 = vpop.permute.xlu0 %802
  %804 = vrot.lane.b32.xlu0 %v796, 2
  %v805 = vpop.permute.xlu0 %804
  %806 = vrot.lane.b32.xlu0 %v798, 2
  %v807 = vpop.permute.xlu0 %806
  %808 = vrot.lane.b32.xlu0 %v800, 2
  %v809 = vpop.permute.xlu0 %808
  %810 = vrot.lane.b32.xlu0 %v795, 2
  %v811 = vpop.permute.xlu0 %810
  %812 = vrot.lane.b32.xlu0 %v797, 2
  %v813 = vpop.permute.xlu0 %812
  %814 = vrot.lane.b32.xlu0 %v799, 2
  %v815 = vpop.permute.xlu0 %814
  %816 = vrot.lane.b32.xlu0 %v801, 2
  %v817 = vpop.permute.xlu0 %816
  %v818 = vsel %vm514, %v803, %v811
  %v819 = vsel %vm514, %v805, %v813
  %v820 = vsel %vm514, %v807, %v815
  %v821 = vsel %vm514, %v809, %v817
  %v822 = vsel %vm514, %v811, %v803
  %v823 = vsel %vm514, %v813, %v805
  %v824 = vsel %vm514, %v815, %v807
  %v825 = vsel %vm514, %v817, %v809
  %826 = vrot.lane.b32.xlu0 %v794, 1
  %v827 = vpop.permute.xlu0 %826
  %828 = vrot.lane.b32.xlu0 %v796, 1
  %v829 = vpop.permute.xlu0 %828
  %830 = vrot.lane.b32.xlu0 %v798, 1
  %v831 = vpop.permute.xlu0 %830
  %832 = vrot.lane.b32.xlu0 %v800, 1
  %v833 = vpop.permute.xlu0 %832
  %834 = vrot.lane.b32.xlu0 %v795, 1
  %v835 = vpop.permute.xlu0 %834
  %836 = vrot.lane.b32.xlu0 %v797, 1
  %v837 = vpop.permute.xlu0 %836
  %838 = vrot.lane.b32.xlu0 %v799, 1
  %v839 = vpop.permute.xlu0 %838
  %840 = vrot.lane.b32.xlu0 %v801, 1
  %v841 = vpop.permute.xlu0 %840
  %v842 = vsel %vm84, %v827, %v835
  %v843 = vsel %vm84, %v829, %v837
  %v844 = vsel %vm84, %v831, %v839
  %v845 = vsel %vm84, %v833, %v841
  %v846 = vsel %vm84, %v835, %v827
  %v847 = vsel %vm84, %v837, %v829
  %v848 = vsel %vm84, %v839, %v831
  %v849 = vsel %vm84, %v841, %v833
  %850 = vrot.lane.b32.xlu0 %v794, 127
  %v851 = vpop.permute.xlu0 %850
  %852 = vrot.lane.b32.xlu0 %v796, 127
  %v853 = vpop.permute.xlu0 %852
  %854 = vrot.lane.b32.xlu0 %v798, 127
  %v855 = vpop.permute.xlu0 %854
  %856 = vrot.lane.b32.xlu0 %v800, 127
  %v857 = vpop.permute.xlu0 %856
  %858 = vrot.lane.b32.xlu0 %v795, 127
  %v859 = vpop.permute.xlu0 %858
  %860 = vrot.lane.b32.xlu0 %v797, 127
  %v861 = vpop.permute.xlu0 %860
  %862 = vrot.lane.b32.xlu0 %v799, 127
  %v863 = vpop.permute.xlu0 %862
  %864 = vrot.lane.b32.xlu0 %v801, 127
  %v865 = vpop.permute.xlu0 %864
  %v866 = vsel %vm97, %v851, %v859
  %v867 = vsel %vm97, %v853, %v861
  %v868 = vsel %vm97, %v855, %v863
  %v869 = vsel %vm97, %v857, %v865
  %v870 = vsel %vm97, %v859, %v851
  %v871 = vsel %vm97, %v861, %v853
  %v872 = vsel %vm97, %v863, %v855
  %v873 = vsel %vm97, %v865, %v857
  %874 = vrot.lane.b32.xlu0 %v794, 126
  %v875 = vpop.permute.xlu0 %874
  %876 = vrot.lane.b32.xlu0 %v796, 126
  %v877 = vpop.permute.xlu0 %876
  %878 = vrot.lane.b32.xlu0 %v798, 126
  %v879 = vpop.permute.xlu0 %878
  %880 = vrot.lane.b32.xlu0 %v800, 126
  %v881 = vpop.permute.xlu0 %880
  %882 = vrot.lane.b32.xlu0 %v795, 126
  %v883 = vpop.permute.xlu0 %882
  %884 = vrot.lane.b32.xlu0 %v797, 126
  %v885 = vpop.permute.xlu0 %884
  %886 = vrot.lane.b32.xlu0 %v799, 126
  %v887 = vpop.permute.xlu0 %886
  %888 = vrot.lane.b32.xlu0 %v801, 126
  %v889 = vpop.permute.xlu0 %888
  %v890 = vsel %vm587, %v875, %v883
  %v891 = vsel %vm587, %v877, %v885
  %v892 = vsel %vm587, %v879, %v887
  %v893 = vsel %vm587, %v881, %v889
  %v894 = vsel %vm587, %v883, %v875
  %v895 = vsel %vm587, %v885, %v877
  %v896 = vsel %vm587, %v887, %v879
  %v897 = vsel %vm587, %v889, %v881
  %v898 = vpack.c.bf16 %v823, %v822
  %v899 = vpack.c.bf16 %v819, %v818
  %v900 = vpack.c.bf16 %v825, %v824
  %v901 = vpack.c.bf16 %v821, %v820
  %v902 = vpack.c.bf16 %v847, %v846
  %v903 = vpack.c.bf16 %v843, %v842
  %v904 = vpack.c.bf16 %v849, %v848
  %v905 = vpack.c.bf16 %v845, %v844
  %v906 = vpack.c.bf16 %v796, %v794
  %v907 = vpack.c.bf16 %v797, %v795
  %v908 = vpack.c.bf16 %v800, %v798
  %v909 = vpack.c.bf16 %v801, %v799
  %v910 = vpack.c.bf16 %v867, %v866
  %v911 = vpack.c.bf16 %v871, %v870
  %v912 = vpack.c.bf16 %v869, %v868
  %v913 = vpack.c.bf16 %v873, %v872
  %v914 = vpack.c.bf16 %v891, %v890
  %v915 = vpack.c.bf16 %v895, %v894
  %v916 = vpack.c.bf16 %v893, %v892
  %v917 = vpack.c.bf16 %v897, %v896
  %919 = vset.pattern.permute.xlu0 0
  %920 = vperm.xlu0 %919, %v790
  %v921 = vpop.permute.xlu0 %920
  %924 = vset.pattern.permute.xlu0 0
  %925 = vperm.xlu0 %924, %v791
  %v926 = vpop.permute.xlu0 %925
  %929 = vset.pattern.permute.xlu0 0
  %930 = vperm.xlu0 %929, %v792
  %v931 = vpop.permute.xlu0 %930
  %934 = vset.pattern.permute.xlu0 0
  %935 = vperm.xlu0 %934, %v793
  %v936 = vpop.permute.xlu0 %935
  %v942 = vunpack.c.l.b16 %v786
  %v943 = vunpack.c.h.b16 %v786
  %v944 = vunpack.c.l.b16 %v787
  %v945 = vunpack.c.h.b16 %v787
  %v946 = vunpack.c.l.b16 %v788
  %v947 = vunpack.c.h.b16 %v788
  %v948 = vunpack.c.l.b16 %v789
  %v949 = vunpack.c.h.b16 %v789
  %v950 = vpack.c.b16 %v944, %v942
  %v951 = vpack.c.b16 %v945, %v943
  %v952 = vpack.c.b16 %v948, %v946
  %v953 = vpack.c.b16 %v949, %v947
  %v957 = vsel %vm692, %v951, 0
  %v960 = vsel %vm692, %v953, 0
  %962 = vmatprep.subr.bf16.mxu0 %v899
  %963 = vmatpush1.bf16.msra.mxu0 %v898
  %964 = vmatprep.subr.bf16.mxu0 %v901
  %965 = vmatpush1.bf16.msra.mxu0 %v900
  %966 = vmatprep.subr.bf16.mxu0 %v903
  %967 = vmatpush1.bf16.msra.mxu0 %v902
  %968 = vmatprep.subr.bf16.mxu0 %v905
  %969 = vmatpush1.bf16.msra.mxu0 %v904
  %970 = vmatprep.subr.bf16.mxu0 %v907
  %971 = vmatpush1.bf16.msra.mxu0 %v906
  %972 = vmatprep.subr.bf16.mxu0 %v909
  %973 = vmatpush1.bf16.msra.mxu0 %v908
  %974 = vmatprep.subr.bf16.mxu0 %v911
  %975 = vmatpush1.bf16.msra.mxu0 %v910
  %976 = vmatprep.subr.bf16.mxu0 %v913
  %977 = vmatpush1.bf16.msra.mxu0 %v912
  %978 = vmatprep.subr.bf16.mxu0 %v915
  %979 = vmatpush1.bf16.msra.mxu0 %v914
  %980 = vmatprep.subr.bf16.mxu0 %v917
  %981 = vmatpush1.bf16.msra.mxu0 %v916
  %982 = vmatprep.subr.bf16.mxu0 0
  %983 = vmatpush1.bf16.msra.mxu0 0
  %984 = vmatprep.subr.bf16.mxu0 0
  %985 = vmatpush1.bf16.msra.mxu0 0
  %986 = vmatprep.subr.bf16.mxu0 0
  %987 = vmatpush1.bf16.msra.mxu0 0
  %988 = vmatprep.subr.bf16.mxu0 0
  %989 = vmatpush1.bf16.msra.mxu0 0
  %990 = vmatprep.subr.bf16.mxu0 0
  %991 = vmatpush1.bf16.msra.mxu0 0
  %992 = vmatprep.subr.bf16.mxu0 0
  %993 = vmatpush1.bf16.msra.mxu0 0
  %994 = vmatprep.mubr.bf16.mxu0 %v957
  %995 = vmatmul.mubr.bf16.gmra.mrb[0].mxu0 %v950
  %v996 = vpop.f32.mrb[0].mxu0
  %v997 = vadd.f32 %v921, %v996
  %v998 = vpop.f32.mrb[0].mxu0
  %v999 = vadd.f32 %v921, %v998
  %v1000 = vpop.f32.mrb[0].mxu0
  %v1001 = vadd.f32 %v926, %v1000
  %v1002 = vpop.f32.mrb[0].mxu0
  %v1003 = vadd.f32 %v926, %v1002
  %1004 = vmatprep.mubr.bf16.mxu0 %v960
  %1005 = vmatmul.mubr.bf16.gmra.mrb[0].mxu0 %v952
  %v1006 = vpop.f32.mrb[0].mxu0
  %v1007 = vadd.f32 %v931, %v1006
  %v1008 = vpop.f32.mrb[0].mxu0
  %v1009 = vadd.f32 %v931, %v1008
  %v1010 = vpop.f32.mrb[0].mxu0
  %v1011 = vadd.f32 %v936, %v1010
  %v1012 = vpop.f32.mrb[0].mxu0
  %v1013 = vadd.f32 %v936, %v1012
  %1014 = vdwg.mxu0
  %v1015 = vmax.f32 %v997, 0.0
  %v1016 = vmax.f32 %v999, 0.0
  %v1017 = vmax.f32 %v1001, 0.0
  %v1018 = vmax.f32 %v1003, 0.0
  %v1019 = vmax.f32 %v1007, 0.0
  %v1020 = vmax.f32 %v1009, 0.0
  %v1021 = vmax.f32 %v1011, 0.0
  %v1022 = vmax.f32 %v1013, 0.0
  %v1023 = vld [vmem:[%s9] sm:$0xff]
  %v1024 = vld [vmem:[%s9 + $0x8] sm:$0xff]
  %v1025 = vld [vmem:[%s9 + $0x10] sm:$0xff]
  %v1026 = vld [vmem:[%s9 + $0x18] sm:$0xff]
  %v1027 = vld [vmem:[%s10] sm:$0xff]
  %v1028 = vld [vmem:[%s10 + $0x8] sm:$0xff]
  %v1029 = vld [vmem:[%s10 + $0x10] sm:$0xff]
  %v1030 = vld [vmem:[%s10 + $0x18] sm:$0xff]
  %v1031 = vmul.f32 %v1015, %v299
  %v1032 = vmul.f32 %v1016, %v299
  %v1033 = vmul.f32 %v1017, %v299
  %v1034 = vmul.f32 %v1018, %v299
  %v1035 = vmul.f32 %v1019, %v299
  %v1036 = vmul.f32 %v1020, %v299
  %v1037 = vmul.f32 %v1021, %v299
  %v1038 = vmul.f32 %v1022, %v299
  %1039 = vrot.lane.b32.xlu0 %v1031, 2
  %v1040 = vpop.permute.xlu0 %1039
  %1041 = vrot.lane.b32.xlu0 %v1033, 2
  %v1042 = vpop.permute.xlu0 %1041
  %1043 = vrot.lane.b32.xlu0 %v1035, 2
  %v1044 = vpop.permute.xlu0 %1043
  %1045 = vrot.lane.b32.xlu0 %v1037, 2
  %v1046 = vpop.permute.xlu0 %1045
  %1047 = vrot.lane.b32.xlu0 %v1032, 2
  %v1048 = vpop.permute.xlu0 %1047
  %1049 = vrot.lane.b32.xlu0 %v1034, 2
  %v1050 = vpop.permute.xlu0 %1049
  %1051 = vrot.lane.b32.xlu0 %v1036, 2
  %v1052 = vpop.permute.xlu0 %1051
  %1053 = vrot.lane.b32.xlu0 %v1038, 2
  %v1054 = vpop.permute.xlu0 %1053
  %v1055 = vsel %vm514, %v1040, %v1048
  %v1056 = vsel %vm514, %v1042, %v1050
  %v1057 = vsel %vm514, %v1044, %v1052
  %v1058 = vsel %vm514, %v1046, %v1054
  %v1059 = vsel %vm514, %v1048, %v1040
  %v1060 = vsel %vm514, %v1050, %v1042
  %v1061 = vsel %vm514, %v1052, %v1044
  %v1062 = vsel %vm514, %v1054, %v1046
  %1063 = vrot.lane.b32.xlu0 %v1031, 1
  %v1064 = vpop.permute.xlu0 %1063
  %1065 = vrot.lane.b32.xlu0 %v1033, 1
  %v1066 = vpop.permute.xlu0 %1065
  %1067 = vrot.lane.b32.xlu0 %v1035, 1
  %v1068 = vpop.permute.xlu0 %1067
  %1069 = vrot.lane.b32.xlu0 %v1037, 1
  %v1070 = vpop.permute.xlu0 %1069
  %1071 = vrot.lane.b32.xlu0 %v1032, 1
  %v1072 = vpop.permute.xlu0 %1071
  %1073 = vrot.lane.b32.xlu0 %v1034, 1
  %v1074 = vpop.permute.xlu0 %1073
  %1075 = vrot.lane.b32.xlu0 %v1036, 1
  %v1076 = vpop.permute.xlu0 %1075
  %1077 = vrot.lane.b32.xlu0 %v1038, 1
  %v1078 = vpop.permute.xlu0 %1077
  %v1079 = vsel %vm84, %v1064, %v1072
  %v1080 = vsel %vm84, %v1066, %v1074
  %v1081 = vsel %vm84, %v1068, %v1076
  %v1082 = vsel %vm84, %v1070, %v1078
  %v1083 = vsel %vm84, %v1072, %v1064
  %v1084 = vsel %vm84, %v1074, %v1066
  %v1085 = vsel %vm84, %v1076, %v1068
  %v1086 = vsel %vm84, %v1078, %v1070
  %1087 = vrot.lane.b32.xlu0 %v1031, 127
  %v1088 = vpop.permute.xlu0 %1087
  %1089 = vrot.lane.b32.xlu0 %v1033, 127
  %v1090 = vpop.permute.xlu0 %1089
  %1091 = vrot.lane.b32.xlu0 %v1035, 127
  %v1092 = vpop.permute.xlu0 %1091
  %1093 = vrot.lane.b32.xlu0 %v1037, 127
  %v1094 = vpop.permute.xlu0 %1093
  %1095 = vrot.lane.b32.xlu0 %v1032, 127
  %v1096 = vpop.permute.xlu0 %1095
  %1097 = vrot.lane.b32.xlu0 %v1034, 127
  %v1098 = vpop.permute.xlu0 %1097
  %1099 = vrot.lane.b32.xlu0 %v1036, 127
  %v1100 = vpop.permute.xlu0 %1099
  %1101 = vrot.lane.b32.xlu0 %v1038, 127
  %v1102 = vpop.permute.xlu0 %1101
  %v1103 = vsel %vm97, %v1088, %v1096
  %v1104 = vsel %vm97, %v1090, %v1098
  %v1105 = vsel %vm97, %v1092, %v1100
  %v1106 = vsel %vm97, %v1094, %v1102
  %v1107 = vsel %vm97, %v1096, %v1088
  %v1108 = vsel %vm97, %v1098, %v1090
  %v1109 = vsel %vm97, %v1100, %v1092
  %v1110 = vsel %vm97, %v1102, %v1094
  %1111 = vrot.lane.b32.xlu0 %v1031, 126
  %v1112 = vpop.permute.xlu0 %1111
  %1113 = vrot.lane.b32.xlu0 %v1033, 126
  %v1114 = vpop.permute.xlu0 %1113
  %1115 = vrot.lane.b32.xlu0 %v1035, 126
  %v1116 = vpop.permute.xlu0 %1115
  %1117 = vrot.lane.b32.xlu0 %v1037, 126
  %v1118 = vpop.permute.xlu0 %1117
  %1119 = vrot.lane.b32.xlu0 %v1032, 126
  %v1120 = vpop.permute.xlu0 %1119
  %1121 = vrot.lane.b32.xlu0 %v1034, 126
  %v1122 = vpop.permute.xlu0 %1121
  %1123 = vrot.lane.b32.xlu0 %v1036, 126
  %v1124 = vpop.permute.xlu0 %1123
  %1125 = vrot.lane.b32.xlu0 %v1038, 126
  %v1126 = vpop.permute.xlu0 %1125
  %v1127 = vsel %vm587, %v1112, %v1120
  %v1128 = vsel %vm587, %v1114, %v1122
  %v1129 = vsel %vm587, %v1116, %v1124
  %v1130 = vsel %vm587, %v1118, %v1126
  %v1131 = vsel %vm587, %v1120, %v1112
  %v1132 = vsel %vm587, %v1122, %v1114
  %v1133 = vsel %vm587, %v1124, %v1116
  %v1134 = vsel %vm587, %v1126, %v1118
  %v1135 = vpack.c.bf16 %v1060, %v1059
  %v1136 = vpack.c.bf16 %v1056, %v1055
  %v1137 = vpack.c.bf16 %v1062, %v1061
  %v1138 = vpack.c.bf16 %v1058, %v1057
  %v1139 = vpack.c.bf16 %v1084, %v1083
  %v1140 = vpack.c.bf16 %v1080, %v1079
  %v1141 = vpack.c.bf16 %v1086, %v1085
  %v1142 = vpack.c.bf16 %v1082, %v1081
  %v1143 = vpack.c.bf16 %v1033, %v1031
  %v1144 = vpack.c.bf16 %v1034, %v1032
  %v1145 = vpack.c.bf16 %v1037, %v1035
  %v1146 = vpack.c.bf16 %v1038, %v1036
  %v1147 = vpack.c.bf16 %v1104, %v1103
  %v1148 = vpack.c.bf16 %v1108, %v1107
  %v1149 = vpack.c.bf16 %v1106, %v1105
  %v1150 = vpack.c.bf16 %v1110, %v1109
  %v1151 = vpack.c.bf16 %v1128, %v1127
  %v1152 = vpack.c.bf16 %v1132, %v1131
  %v1153 = vpack.c.bf16 %v1130, %v1129
  %v1154 = vpack.c.bf16 %v1134, %v1133
  %1156 = vset.pattern.permute.xlu0 0
  %1157 = vperm.xlu0 %1156, %v1027
  %v1158 = vpop.permute.xlu0 %1157
  %1161 = vset.pattern.permute.xlu0 0
  %1162 = vperm.xlu0 %1161, %v1028
  %v1163 = vpop.permute.xlu0 %1162
  %1166 = vset.pattern.permute.xlu0 0
  %1167 = vperm.xlu0 %1166, %v1029
  %v1168 = vpop.permute.xlu0 %1167
  %1171 = vset.pattern.permute.xlu0 0
  %1172 = vperm.xlu0 %1171, %v1030
  %v1173 = vpop.permute.xlu0 %1172
  %v1179 = vunpack.c.l.b16 %v1023
  %v1180 = vunpack.c.h.b16 %v1023
  %v1181 = vunpack.c.l.b16 %v1024
  %v1182 = vunpack.c.h.b16 %v1024
  %v1183 = vunpack.c.l.b16 %v1025
  %v1184 = vunpack.c.h.b16 %v1025
  %v1185 = vunpack.c.l.b16 %v1026
  %v1186 = vunpack.c.h.b16 %v1026
  %v1187 = vpack.c.b16 %v1181, %v1179
  %v1188 = vpack.c.b16 %v1182, %v1180
  %v1189 = vpack.c.b16 %v1185, %v1183
  %v1190 = vpack.c.b16 %v1186, %v1184
  %v1194 = vsel %vm692, %v1188, 0
  %v1197 = vsel %vm692, %v1190, 0
  %1199 = vmatprep.subr.bf16.mxu0 %v1136
  %1200 = vmatpush1.bf16.msra.mxu0 %v1135
  %1201 = vmatprep.subr.bf16.mxu0 %v1138
  %1202 = vmatpush1.bf16.msra.mxu0 %v1137
  %1203 = vmatprep.subr.bf16.mxu0 %v1140
  %1204 = vmatpush1.bf16.msra.mxu0 %v1139
  %1205 = vmatprep.subr.bf16.mxu0 %v1142
  %1206 = vmatpush1.bf16.msra.mxu0 %v1141
  %1207 = vmatprep.subr.bf16.mxu0 %v1144
  %1208 = vmatpush1.bf16.msra.mxu0 %v1143
  %1209 = vmatprep.subr.bf16.mxu0 %v1146
  %1210 = vmatpush1.bf16.msra.mxu0 %v1145
  %1211 = vmatprep.subr.bf16.mxu0 %v1148
  %1212 = vmatpush1.bf16.msra.mxu0 %v1147
  %1213 = vmatprep.subr.bf16.mxu0 %v1150
  %1214 = vmatpush1.bf16.msra.mxu0 %v1149
  %1215 = vmatprep.subr.bf16.mxu0 %v1152
  %1216 = vmatpush1.bf16.msra.mxu0 %v1151
  %1217 = vmatprep.subr.bf16.mxu0 %v1154
  %1218 = vmatpush1.bf16.msra.mxu0 %v1153
  %1219 = vmatprep.subr.bf16.mxu0 0
  %1220 = vmatpush1.bf16.msra.mxu0 0
  %1221 = vmatprep.subr.bf16.mxu0 0
  %1222 = vmatpush1.bf16.msra.mxu0 0
  %1223 = vmatprep.subr.bf16.mxu0 0
  %1224 = vmatpush1.bf16.msra.mxu0 0
  %1225 = vmatprep.subr.bf16.mxu0 0
  %1226 = vmatpush1.bf16.msra.mxu0 0
  %1227 = vmatprep.subr.bf16.mxu0 0
  %1228 = vmatpush1.bf16.msra.mxu0 0
  %1229 = vmatprep.subr.bf16.mxu0 0
  %1230 = vmatpush1.bf16.msra.mxu0 0
  %1231 = vmatprep.mubr.bf16.mxu0 %v1194
  %1232 = vmatmul.mubr.bf16.gmra.mrb[0].mxu0 %v1187
  %v1233 = vpop.f32.mrb[0].mxu0
  %v1234 = vadd.f32 %v1158, %v1233
  %v1235 = vpop.f32.mrb[0].mxu0
  %v1236 = vadd.f32 %v1158, %v1235
  %v1237 = vpop.f32.mrb[0].mxu0
  %v1238 = vadd.f32 %v1163, %v1237
  %v1239 = vpop.f32.mrb[0].mxu0
  %v1240 = vadd.f32 %v1163, %v1239
  %1241 = vmatprep.mubr.bf16.mxu0 %v1197
  %1242 = vmatmul.mubr.bf16.gmra.mrb[0].mxu0 %v1189
  %v1243 = vpop.f32.mrb[0].mxu0
  %v1244 = vadd.f32 %v1168, %v1243
  %v1245 = vpop.f32.mrb[0].mxu0
  %v1246 = vadd.f32 %v1168, %v1245
  %v1247 = vpop.f32.mrb[0].mxu0
  %v1248 = vadd.f32 %v1173, %v1247
  %v1249 = vpop.f32.mrb[0].mxu0
  %v1250 = vadd.f32 %v1173, %v1249
  %1251 = vdwg.mxu0
  %v1252 = vadd.f32 %v1234, %v760
  %v1253 = vadd.f32 %v1236, %v762
  %v1254 = vadd.f32 %v1238, %v764
  %v1255 = vadd.f32 %v1240, %v766
  %v1256 = vadd.f32 %v1244, %v770
  %v1257 = vadd.f32 %v1246, %v772
  %v1258 = vadd.f32 %v1248, %v774
  %v1259 = vadd.f32 %v1250, %v776
  %v1260 = vmax.f32 %v1252, 0.0
  %v1261 = vmax.f32 %v1253, 0.0
  %v1262 = vmax.f32 %v1254, 0.0
  %v1263 = vmax.f32 %v1255, 0.0
  %v1264 = vmax.f32 %v1256, 0.0
  %v1265 = vmax.f32 %v1257, 0.0
  %v1266 = vmax.f32 %v1258, 0.0
  %v1267 = vmax.f32 %v1259, 0.0
  %v1268 = vld [vmem:[%s11] sm:$0xff]
  %v1269 = vld [vmem:[%s11 + $0x8] sm:$0xff]
  %v1270 = vld [vmem:[%s11 + $0x10] sm:$0xff]
  %v1271 = vld [vmem:[%s11 + $0x18] sm:$0xff]
  %v1272 = vld [vmem:[%s11 + $0x20] sm:$0xff]
  %v1273 = vld [vmem:[%s11 + $0x28] sm:$0xff]
  %v1274 = vld [vmem:[%s12] sm:$0xff]
  %v1275 = vld [vmem:[%s12 + $0x8] sm:$0xff]
  %v1276 = vld [vmem:[%s12 + $0x10] sm:$0xff]
  %v1277 = vld [vmem:[%s12 + $0x18] sm:$0xff]
  %v1278 = vld [vmem:[%s12 + $0x20] sm:$0xff]
  %v1279 = vld [vmem:[%s12 + $0x28] sm:$0xff]
  %v1280 = vmul.f32 %v1260, %v299
  %v1281 = vmul.f32 %v1261, %v299
  %v1282 = vmul.f32 %v1262, %v299
  %v1283 = vmul.f32 %v1263, %v299
  %v1284 = vmul.f32 %v1264, %v299
  %v1285 = vmul.f32 %v1265, %v299
  %v1286 = vmul.f32 %v1266, %v299
  %v1287 = vmul.f32 %v1267, %v299
  %1288 = vrot.lane.b32.xlu0 %v1280, 3
  %v1289 = vpop.permute.xlu0 %1288
  %1290 = vrot.lane.b32.xlu0 %v1282, 3
  %v1291 = vpop.permute.xlu0 %1290
  %1292 = vrot.lane.b32.xlu0 %v1284, 3
  %v1293 = vpop.permute.xlu0 %1292
  %1294 = vrot.lane.b32.xlu0 %v1286, 3
  %v1295 = vpop.permute.xlu0 %1294
  %1296 = vrot.lane.b32.xlu0 %v1281, 3
  %v1297 = vpop.permute.xlu0 %1296
  %1298 = vrot.lane.b32.xlu0 %v1283, 3
  %v1299 = vpop.permute.xlu0 %1298
  %1300 = vrot.lane.b32.xlu0 %v1285, 3
  %v1301 = vpop.permute.xlu0 %1300
  %1302 = vrot.lane.b32.xlu0 %v1287, 3
  %v1303 = vpop.permute.xlu0 %1302
  %vm1304 = vcmp.lt.s32.totalorder %v52, 3
  %v1305 = vsel %vm1304, %v1289, %v1297
  %v1306 = vsel %vm1304, %v1291, %v1299
  %v1307 = vsel %vm1304, %v1293, %v1301
  %v1308 = vsel %vm1304, %v1295, %v1303
  %v1309 = vsel %vm1304, %v1297, %v1289
  %v1310 = vsel %vm1304, %v1299, %v1291
  %v1311 = vsel %vm1304, %v1301, %v1293
  %v1312 = vsel %vm1304, %v1303, %v1295
  %1313 = vrot.lane.b32.xlu0 %v1280, 2
  %v1314 = vpop.permute.xlu0 %1313
  %1315 = vrot.lane.b32.xlu0 %v1282, 2
  %v1316 = vpop.permute.xlu0 %1315
  %1317 = vrot.lane.b32.xlu0 %v1284, 2
  %v1318 = vpop.permute.xlu0 %1317
  %1319 = vrot.lane.b32.xlu0 %v1286, 2
  %v1320 = vpop.permute.xlu0 %1319
  %1321 = vrot.lane.b32.xlu0 %v1281, 2
  %v1322 = vpop.permute.xlu0 %1321
  %1323 = vrot.lane.b32.xlu0 %v1283, 2
  %v1324 = vpop.permute.xlu0 %1323
  %1325 = vrot.lane.b32.xlu0 %v1285, 2
  %v1326 = vpop.permute.xlu0 %1325
  %1327 = vrot.lane.b32.xlu0 %v1287, 2
  %v1328 = vpop.permute.xlu0 %1327
  %v1329 = vsel %vm514, %v1314, %v1322
  %v1330 = vsel %vm514, %v1316, %v1324
  %v1331 = vsel %vm514, %v1318, %v1326
  %v1332 = vsel %vm514, %v1320, %v1328
  %v1333 = vsel %vm514, %v1322, %v1314
  %v1334 = vsel %vm514, %v1324, %v1316
  %v1335 = vsel %vm514, %v1326, %v1318
  %v1336 = vsel %vm514, %v1328, %v1320
  %1337 = vrot.lane.b32.xlu0 %v1280, 1
  %v1338 = vpop.permute.xlu0 %1337
  %1339 = vrot.lane.b32.xlu0 %v1282, 1
  %v1340 = vpop.permute.xlu0 %1339
  %1341 = vrot.lane.b32.xlu0 %v1284, 1
  %v1342 = vpop.permute.xlu0 %1341
  %1343 = vrot.lane.b32.xlu0 %v1286, 1
  %v1344 = vpop.permute.xlu0 %1343
  %1345 = vrot.lane.b32.xlu0 %v1281, 1
  %v1346 = vpop.permute.xlu0 %1345
  %1347 = vrot.lane.b32.xlu0 %v1283, 1
  %v1348 = vpop.permute.xlu0 %1347
  %1349 = vrot.lane.b32.xlu0 %v1285, 1
  %v1350 = vpop.permute.xlu0 %1349
  %1351 = vrot.lane.b32.xlu0 %v1287, 1
  %v1352 = vpop.permute.xlu0 %1351
  %v1353 = vsel %vm84, %v1338, %v1346
  %v1354 = vsel %vm84, %v1340, %v1348
  %v1355 = vsel %vm84, %v1342, %v1350
  %v1356 = vsel %vm84, %v1344, %v1352
  %v1357 = vsel %vm84, %v1346, %v1338
  %v1358 = vsel %vm84, %v1348, %v1340
  %v1359 = vsel %vm84, %v1350, %v1342
  %v1360 = vsel %vm84, %v1352, %v1344
  %1361 = vrot.lane.b32.xlu0 %v1280, 127
  %v1362 = vpop.permute.xlu0 %1361
  %1363 = vrot.lane.b32.xlu0 %v1282, 127
  %v1364 = vpop.permute.xlu0 %1363
  %1365 = vrot.lane.b32.xlu0 %v1284, 127
  %v1366 = vpop.permute.xlu0 %1365
  %1367 = vrot.lane.b32.xlu0 %v1286, 127
  %v1368 = vpop.permute.xlu0 %1367
  %1369 = vrot.lane.b32.xlu0 %v1281, 127
  %v1370 = vpop.permute.xlu0 %1369
  %1371 = vrot.lane.b32.xlu0 %v1283, 127
  %v1372 = vpop.permute.xlu0 %1371
  %1373 = vrot.lane.b32.xlu0 %v1285, 127
  %v1374 = vpop.permute.xlu0 %1373
  %1375 = vrot.lane.b32.xlu0 %v1287, 127
  %v1376 = vpop.permute.xlu0 %1375
  %v1377 = vsel %vm97, %v1362, %v1370
  %v1378 = vsel %vm97, %v1364, %v1372
  %v1379 = vsel %vm97, %v1366, %v1374
  %v1380 = vsel %vm97, %v1368, %v1376
  %v1381 = vsel %vm97, %v1370, %v1362
  %v1382 = vsel %vm97, %v1372, %v1364
  %v1383 = vsel %vm97, %v1374, %v1366
  %v1384 = vsel %vm97, %v1376, %v1368
  %1385 = vrot.lane.b32.xlu0 %v1280, 126
  %v1386 = vpop.permute.xlu0 %1385
  %1387 = vrot.lane.b32.xlu0 %v1282, 126
  %v1388 = vpop.permute.xlu0 %1387
  %1389 = vrot.lane.b32.xlu0 %v1284, 126
  %v1390 = vpop.permute.xlu0 %1389
  %1391 = vrot.lane.b32.xlu0 %v1286, 126
  %v1392 = vpop.permute.xlu0 %1391
  %1393 = vrot.lane.b32.xlu0 %v1281, 126
  %v1394 = vpop.permute.xlu0 %1393
  %1395 = vrot.lane.b32.xlu0 %v1283, 126
  %v1396 = vpop.permute.xlu0 %1395
  %1397 = vrot.lane.b32.xlu0 %v1285, 126
  %v1398 = vpop.permute.xlu0 %1397
  %1399 = vrot.lane.b32.xlu0 %v1287, 126
  %v1400 = vpop.permute.xlu0 %1399
  %v1401 = vsel %vm587, %v1386, %v1394
  %v1402 = vsel %vm587, %v1388, %v1396
  %v1403 = vsel %vm587, %v1390, %v1398
  %v1404 = vsel %vm587, %v1392, %v1400
  %v1405 = vsel %vm587, %v1394, %v1386
  %v1406 = vsel %vm587, %v1396, %v1388
  %v1407 = vsel %vm587, %v1398, %v1390
  %v1408 = vsel %vm587, %v1400, %v1392
  %1409 = vrot.lane.b32.xlu0 %v1280, 125
  %v1410 = vpop.permute.xlu0 %1409
  %1411 = vrot.lane.b32.xlu0 %v1282, 125
  %v1412 = vpop.permute.xlu0 %1411
  %1413 = vrot.lane.b32.xlu0 %v1284, 125
  %v1414 = vpop.permute.xlu0 %1413
  %1415 = vrot.lane.b32.xlu0 %v1286, 125
  %v1416 = vpop.permute.xlu0 %1415
  %1417 = vrot.lane.b32.xlu0 %v1281, 125
  %v1418 = vpop.permute.xlu0 %1417
  %1419 = vrot.lane.b32.xlu0 %v1283, 125
  %v1420 = vpop.permute.xlu0 %1419
  %1421 = vrot.lane.b32.xlu0 %v1285, 125
  %v1422 = vpop.permute.xlu0 %1421
  %1423 = vrot.lane.b32.xlu0 %v1287, 125
  %v1424 = vpop.permute.xlu0 %1423
  %vm1425 = vcmp.lt.s32.totalorder %v52, 125
  %v1426 = vsel %vm1425, %v1410, %v1418
  %v1427 = vsel %vm1425, %v1412, %v1420
  %v1428 = vsel %vm1425, %v1414, %v1422
  %v1429 = vsel %vm1425, %v1416, %v1424
  %v1430 = vsel %vm1425, %v1418, %v1410
  %v1431 = vsel %vm1425, %v1420, %v1412
  %v1432 = vsel %vm1425, %v1422, %v1414
  %v1433 = vsel %vm1425, %v1424, %v1416
  %v1434 = vpack.c.bf16 %v1310, %v1309
  %v1435 = vpack.c.bf16 %v1306, %v1305
  %v1436 = vpack.c.bf16 %v1312, %v1311
  %v1437 = vpack.c.bf16 %v1308, %v1307
  %v1438 = vpack.c.bf16 %v1334, %v1333
  %v1439 = vpack.c.bf16 %v1330, %v1329
  %v1440 = vpack.c.bf16 %v1336, %v1335
  %v1441 = vpack.c.bf16 %v1332, %v1331
  %v1442 = vpack.c.bf16 %v1358, %v1357
  %v1443 = vpack.c.bf16 %v1354, %v1353
  %v1444 = vpack.c.bf16 %v1360, %v1359
  %v1445 = vpack.c.bf16 %v1356, %v1355
  %v1446 = vpack.c.bf16 %v1282, %v1280
  %v1447 = vpack.c.bf16 %v1283, %v1281
  %v1448 = vpack.c.bf16 %v1286, %v1284
  %v1449 = vpack.c.bf16 %v1287, %v1285
  %v1450 = vpack.c.bf16 %v1378, %v1377
  %v1451 = vpack.c.bf16 %v1382, %v1381
  %v1452 = vpack.c.bf16 %v1380, %v1379
  %v1453 = vpack.c.bf16 %v1384, %v1383
  %v1454 = vpack.c.bf16 %v1402, %v1401
  %v1455 = vpack.c.bf16 %v1406, %v1405
  %v1456 = vpack.c.bf16 %v1404, %v1403
  %v1457 = vpack.c.bf16 %v1408, %v1407
  %v1458 = vpack.c.bf16 %v1427, %v1426
  %v1459 = vpack.c.bf16 %v1431, %v1430
  %v1460 = vpack.c.bf16 %v1429, %v1428
  %v1461 = vpack.c.bf16 %v1433, %v1432
  %1463 = vset.pattern.permute.xlu0 0
  %1464 = vperm.xlu0 %1463, %v1274
  %v1465 = vpop.permute.xlu0 %1464
  %1468 = vset.pattern.permute.xlu0 0
  %1469 = vperm.xlu0 %1468, %v1275
  %v1470 = vpop.permute.xlu0 %1469
  %1473 = vset.pattern.permute.xlu0 0
  %1474 = vperm.xlu0 %1473, %v1276
  %v1475 = vpop.permute.xlu0 %1474
  %1478 = vset.pattern.permute.xlu0 0
  %1479 = vperm.xlu0 %1478, %v1277
  %v1480 = vpop.permute.xlu0 %1479
  %1483 = vset.pattern.permute.xlu0 0
  %1484 = vperm.xlu0 %1483, %v1278
  %v1485 = vpop.permute.xlu0 %1484
  %1488 = vset.pattern.permute.xlu0 0
  %1489 = vperm.xlu0 %1488, %v1279
  %v1490 = vpop.permute.xlu0 %1489
  %v1498 = vunpack.c.l.b16 %v1268
  %v1499 = vunpack.c.h.b16 %v1268
  %v1500 = vunpack.c.l.b16 %v1269
  %v1501 = vunpack.c.h.b16 %v1269
  %v1502 = vunpack.c.l.b16 %v1270
  %v1503 = vunpack.c.h.b16 %v1270
  %v1504 = vunpack.c.l.b16 %v1271
  %v1505 = vunpack.c.h.b16 %v1271
  %v1506 = vunpack.c.l.b16 %v1272
  %v1507 = vunpack.c.h.b16 %v1272
  %v1508 = vunpack.c.l.b16 %v1273
  %v1509 = vunpack.c.h.b16 %v1273
  %v1510 = vpack.c.b16 %v1500, %v1498
  %v1511 = vpack.c.b16 %v1501, %v1499
  %v1512 = vpack.c.b16 %v1504, %v1502
  %v1513 = vpack.c.b16 %v1505, %v1503
  %v1514 = vpack.c.b16 %v1508, %v1506
  %v1515 = vpack.c.b16 %v1509, %v1507
  %v1520 = vsel %vm398, %v1511, 0
  %v1523 = vsel %vm398, %v1513, 0
  %v1526 = vsel %vm398, %v1515, 0
  %1528 = vmatprep.subr.bf16.mxu0 %v1435
  %1529 = vmatpush1.bf16.msra.mxu0 %v1434
  %1530 = vmatprep.subr.bf16.mxu0 %v1437
  %1531 = vmatpush1.bf16.msra.mxu0 %v1436
  %1532 = vmatprep.subr.bf16.mxu0 %v1439
  %1533 = vmatpush1.bf16.msra.mxu0 %v1438
  %1534 = vmatprep.subr.bf16.mxu0 %v1441
  %1535 = vmatpush1.bf16.msra.mxu0 %v1440
  %1536 = vmatprep.subr.bf16.mxu0 %v1443
  %1537 = vmatpush1.bf16.msra.mxu0 %v1442
  %1538 = vmatprep.subr.bf16.mxu0 %v1445
  %1539 = vmatpush1.bf16.msra.mxu0 %v1444
  %1540 = vmatprep.subr.bf16.mxu0 %v1447
  %1541 = vmatpush1.bf16.msra.mxu0 %v1446
  %1542 = vmatprep.subr.bf16.mxu0 %v1449
  %1543 = vmatpush1.bf16.msra.mxu0 %v1448
  %1544 = vmatprep.subr.bf16.mxu0 %v1451
  %1545 = vmatpush1.bf16.msra.mxu0 %v1450
  %1546 = vmatprep.subr.bf16.mxu0 %v1453
  %1547 = vmatpush1.bf16.msra.mxu0 %v1452
  %1548 = vmatprep.subr.bf16.mxu0 %v1455
  %1549 = vmatpush1.bf16.msra.mxu0 %v1454
  %1550 = vmatprep.subr.bf16.mxu0 %v1457
  %1551 = vmatpush1.bf16.msra.mxu0 %v1456
  %1552 = vmatprep.subr.bf16.mxu0 %v1459
  %1553 = vmatpush1.bf16.msra.mxu0 %v1458
  %1554 = vmatprep.subr.bf16.mxu0 %v1461
  %1555 = vmatpush1.bf16.msra.mxu0 %v1460
  %1556 = vmatprep.subr.bf16.mxu0 0
  %1557 = vmatpush1.bf16.msra.mxu0 0
  %1558 = vmatprep.subr.bf16.mxu0 0
  %1559 = vmatpush1.bf16.msra.mxu0 0
  %1560 = vmatprep.mubr.bf16.mxu0 %v1520
  %1561 = vmatmul.mubr.bf16.gmra.mrb[0].mxu0 %v1510
  %v1562 = vpop.f32.mrb[0].mxu0
  %v1563 = vadd.f32 %v1465, %v1562
  %v1564 = vpop.f32.mrb[0].mxu0
  %v1565 = vadd.f32 %v1465, %v1564
  %v1566 = vpop.f32.mrb[0].mxu0
  %v1567 = vadd.f32 %v1470, %v1566
  %v1568 = vpop.f32.mrb[0].mxu0
  %v1569 = vadd.f32 %v1470, %v1568
  %1570 = vmatprep.mubr.bf16.mxu0 %v1523
  %1571 = vmatmul.mubr.bf16.gmra.mrb[0].mxu0 %v1512
  %v1572 = vpop.f32.mrb[0].mxu0
  %v1573 = vadd.f32 %v1475, %v1572
  %v1574 = vpop.f32.mrb[0].mxu0
  %v1575 = vadd.f32 %v1475, %v1574
  %v1576 = vpop.f32.mrb[0].mxu0
  %v1577 = vadd.f32 %v1480, %v1576
  %v1578 = vpop.f32.mrb[0].mxu0
  %v1579 = vadd.f32 %v1480, %v1578
  %1580 = vmatprep.mubr.bf16.mxu0 %v1526
  %1581 = vmatmul.mubr.bf16.gmra.mrb[0].mxu0 %v1514
  %v1582 = vpop.f32.mrb[0].mxu0
  %v1583 = vadd.f32 %v1485, %v1582
  %v1584 = vpop.f32.mrb[0].mxu0
  %v1585 = vadd.f32 %v1485, %v1584
  %v1586 = vpop.f32.mrb[0].mxu0
  %v1587 = vadd.f32 %v1490, %v1586
  %v1588 = vpop.f32.mrb[0].mxu0
  %v1589 = vadd.f32 %v1490, %v1588
  %1590 = vdwg.mxu0
  %v1591 = vmax.f32 %v1563, 0.0
  %v1592 = vmax.f32 %v1565, 0.0
  %v1593 = vmax.f32 %v1567, 0.0
  %v1594 = vmax.f32 %v1569, 0.0
  %v1595 = vmax.f32 %v1573, 0.0
  %v1596 = vmax.f32 %v1575, 0.0
  %v1597 = vmax.f32 %v1577, 0.0
  %v1598 = vmax.f32 %v1579, 0.0
  %v1599 = vmax.f32 %v1583, 0.0
  %v1600 = vmax.f32 %v1585, 0.0
  %v1601 = vmax.f32 %v1587, 0.0
  %v1602 = vmax.f32 %v1589, 0.0
  %v1603 = vld [vmem:[%s13] sm:$0xff]
  %v1604 = vld [vmem:[%s13 + $0x8] sm:$0x3]
  %v1605 = vld [vmem:[%s14] sm:$0xff]
  %v1606 = vld [vmem:[%s14 + $0x8] sm:$0x3]
  %1608 = vset.pattern.permute.xlu0 0
  %1609 = vperm.xlu0 %1608, %v1605
  %v1610 = vpop.permute.xlu0 %1609
  %1613 = vset.pattern.permute.xlu0 0
  %1614 = vperm.xlu0 %1613, %v1606
  %v1615 = vpop.permute.xlu0 %1614
  %v1618 = vsel %vm142, %v1603, 0
  %v1621 = vsel %vm142, %v1604, 0
  %1623 = vmatprep.subr.mxu0 %v1592
  %1624 = vmatpush1.msra.mxu0 %v1591
  %1625 = vmatprep.subr.mxu0 %v1594
  %1626 = vmatpush1.msra.mxu0 %v1593
  %1627 = vmatprep.subr.mxu0 %v1596
  %1628 = vmatpush1.msra.mxu0 %v1595
  %1629 = vmatprep.subr.mxu0 %v1598
  %1630 = vmatpush1.msra.mxu0 %v1597
  %1631 = vmatprep.subr.mxu0 %v1600
  %1632 = vmatpush1.msra.mxu0 %v1599
  %1633 = vmatprep.subr.mxu0 %v1602
  %1634 = vmatpush1.msra.mxu0 %v1601
  %1635 = vmatprep.subr.mxu0 0.0
  %1636 = vmatpush1.msra.mxu0 0.0
  %1637 = vmatprep.subr.mxu0 0.0
  %1638 = vmatpush1.msra.mxu0 0.0
  %1639 = vmatprep.subr.mxu0 0.0
  %1640 = vmatpush1.msra.mxu0 0.0
  %1641 = vmatprep.subr.mxu0 0.0
  %1642 = vmatpush1.msra.mxu0 0.0
  %1643 = vmatprep.subr.mxu0 0.0
  %1644 = vmatpush1.msra.mxu0 0.0
  %1645 = vmatprep.subr.mxu0 0.0
  %1646 = vmatpush1.msra.mxu0 0.0
  %1647 = vmatprep.subr.mxu0 0.0
  %1648 = vmatpush1.msra.mxu0 0.0
  %1649 = vmatprep.subr.mxu0 0.0
  %1650 = vmatpush1.msra.mxu0 0.0
  %1651 = vmatprep.subr.mxu0 0.0
  %1652 = vmatpush1.msra.mxu0 0.0
  %1653 = vmatprep.subr.mxu0 0.0
  %1654 = vmatpush1.msra.mxu0 0.0
  %1655 = vmatprep.subr.mxu0 0.0
  %1656 = vmatpush1.msra.mxu0 0.0
  %1657 = vmatprep.subr.mxu0 0.0
  %1658 = vmatpush1.msra.mxu0 0.0
  %1659 = vmatprep.subr.mxu0 0.0
  %1660 = vmatpush1.msra.mxu0 0.0
  %1661 = vmatprep.subr.mxu0 0.0
  %1662 = vmatpush1.msra.mxu0 0.0
  %1663 = vmatprep.subr.mxu0 0.0
  %1664 = vmatpush1.msra.mxu0 0.0
  %1665 = vmatprep.subr.mxu0 0.0
  %1666 = vmatpush1.msra.mxu0 0.0
  %1667 = vmatprep.subr.mxu0 0.0
  %1668 = vmatpush1.msra.mxu0 0.0
  %1669 = vmatprep.subr.mxu0 0.0
  %1670 = vmatpush1.msra.mxu0 0.0
  %1671 = vmatprep.subr.mxu0 0.0
  %1672 = vmatpush1.msra.mxu0 0.0
  %1673 = vmatprep.subr.mxu0 0.0
  %1674 = vmatpush1.msra.mxu0 0.0
  %1675 = vmatprep.subr.mxu0 0.0
  %1676 = vmatpush1.msra.mxu0 0.0
  %1677 = vmatprep.subr.mxu0 0.0
  %1678 = vmatpush1.msra.mxu0 0.0
  %1679 = vmatprep.subr.mxu0 0.0
  %1680 = vmatpush1.msra.mxu0 0.0
  %1681 = vmatprep.subr.mxu0 0.0
  %1682 = vmatpush1.msra.mxu0 0.0
  %1683 = vmatprep.subr.mxu0 0.0
  %1684 = vmatpush1.msra.mxu0 0.0
  %1685 = vmatprep.subr.mxu0 0.0
  %1686 = vmatpush1.msra.mxu0 0.0
  %1687 = vmatprep.mubr.f32.mxu0 0.0
  %1688 = vmatmul.mubr.f32.gmra.mrb[0].mxu0 %v1618
  %v1689 = vpop.f32.mrb[0].mxu0
  %v1690 = vadd.f32 %v1610, %v1689
  %v1691 = vpop.f32.mrb[0].mxu0
  %v1692 = vadd.f32 %v1610, %v1691
  %1693 = vmatprep.mubr.f32.mxu0 0.0
  %1694 = vmatmul.mubr.f32.gmra.mrb[0].mxu0 %v1621
  %v1695 = vpop.f32.mrb[0].mxu0
  %v1696 = vadd.f32 %v1615, %v1695
  %v1697 = vpop.f32.mrb[0].mxu0
  %v1698 = vadd.f32 %v1615, %v1697
  %1699 = vdwg.mxu0
  %1700 = vst [vmem:[%s15] sm:$0xff] %v1690
  %1701 = vst [vmem:[%s15 + $0x8] sm:$0xff] %v1692
  %1702 = vst [vmem:[%s15 + $0x10] sm:$0x3] %v1696
  %1703 = vst [vmem:[%s15 + $0x18] sm:$0x3] %v1698
  // Predicated region
  $region62: #{_lambda_.1} parent=0 // pred_check
    _
  $region63: #{_lambda_.1} parent=0 // pred_check_branch
    %1705 = sbr.rel (0) target = $region65
  $region64: #{_lambda_.1} parent=0 // pred_region
    _
  $region65: #{_lambda_.1} parent=0 // pred_fallthru
    _
  // Predicated region
  $region66: #{_lambda_.1} parent=0 // pred_check
    _
  $region67: #{_lambda_.1} parent=0 // pred_check_branch
    %1707 = sbr.rel (0) target = $region69
  $region68: #{_lambda_.1} parent=0 // pred_region
    _
  $region69: #{_lambda_.1} parent=0 // pred_fallthru
    _

</llo_original>
